<compile_context>
chip_gen: v6e
topology: v6e:2x2x1
jax: 0.10.0
libtpu: 0.0.40
codegen_flags: <defaults>
</compile_context>

<pallas_src>
import jax
import jax.numpy as jnp
from jax import lax
from jax.experimental import pallas as pl
from jax.experimental.pallas import tpu as pltpu

FRAME = 128       # samples per frame (lane dim)
EMB = 128         # embedding dim
BLK = 1024        # frames per grid step (sublane dim of the streamed block)
ACC_ROWS = 8      # full-vreg accumulator rows (sublane reduce deferred)


def _sim_kernel(a_ref, b_ref, w_ref, o_ref, a_acc, b_acc):
    """Grid = (pair, frame_block).  Per step: accumulate raw-frame partial sums
    (full-vreg accumulators, elementwise VPU adds only).  On the last frame
    block: one small projection per waveform + cosine similarity."""
    k = pl.program_id(1)

    @pl.when(k == 0)
    def _():
        a_acc[...] = jnp.zeros_like(a_acc)
        b_acc[...] = jnp.zeros_like(b_acc)

    # [BLK, FRAME] bf16 -> f32, folded into an [ACC_ROWS, FRAME] partial sum.
    # Summing over the leading (non-tiled) axis is pure vreg-to-vreg adds;
    # the cross-sublane reduce is deferred to the epilogue.
    a = a_ref[0].astype(jnp.float32).reshape(BLK // ACC_ROWS, ACC_ROWS, FRAME)
    b = b_ref[0].astype(jnp.float32).reshape(BLK // ACC_ROWS, ACC_ROWS, FRAME)
    a_acc[...] += jnp.sum(a, axis=0)
    b_acc[...] += jnp.sum(b, axis=0)

    @pl.when(k == pl.num_programs(1) - 1)
    def _():
        # Pooling commutes with the linear projection: project the (partial)
        # frame sums once, then finish the sublane reduce.
        ea = jnp.sum(
            jnp.dot(a_acc[...], w_ref[...], preferred_element_type=jnp.float32),
            axis=0, keepdims=True)                      # [1, EMB]
        eb = jnp.sum(
            jnp.dot(b_acc[...], w_ref[...], preferred_element_type=jnp.float32),
            axis=0, keepdims=True)                      # [1, EMB]
        num = jnp.sum(ea * eb)
        den2 = jnp.sum(ea * ea) * jnp.sum(eb * eb)
        cos = num * lax.rsqrt(den2 + 1e-12)
        # lane-dense padded output block; host reads [:, 0, 0]
        o_ref[...] = cos * jnp.ones((1, ACC_ROWS, EMB), jnp.float32)


@jax.jit
def _pairwise_cosine_sim(a_frames, b_frames, w):
    """a_frames/b_frames: [P, NF, FRAME] bf16 (NF a multiple of BLK).
    Returns [P] f32 cosine similarities."""
    n_pairs, n_frames, _ = a_frames.shape
    n_blocks = n_frames // BLK
    out = pl.pallas_call(
        _sim_kernel,
        out_shape=jax.ShapeDtypeStruct((n_pairs, ACC_ROWS, EMB), jnp.float32),
        grid_spec=pltpu.PrefetchScalarGridSpec(
            num_scalar_prefetch=0,
            grid=(n_pairs, n_blocks),
            in_specs=[
                pl.BlockSpec((1, BLK, FRAME), lambda p, k: (p, k, 0)),
                pl.BlockSpec((1, BLK, FRAME), lambda p, k: (p, k, 0)),
                pl.BlockSpec((FRAME, EMB), lambda p, k: (0, 0)),
            ],
            out_specs=pl.BlockSpec((1, ACC_ROWS, EMB), lambda p, k: (p, 0, 0)),
            scratch_shapes=[
                pltpu.VMEM((ACC_ROWS, FRAME), jnp.float32),
                pltpu.VMEM((ACC_ROWS, FRAME), jnp.float32),
            ],
        ),
        compiler_params=pltpu.CompilerParams(
            # pair axis parallel (both TCs on v7x); frame-block axis is the
            # streaming reduction and must stay sequential per pair.
            dimension_semantics=("parallel", "arbitrary"),
        ),
    )(a_frames, b_frames, w)
    return out[:, 0, 0]


def _frame(wav, n_frames):
    """Frame a 1-D waveform into [n_frames, FRAME] bf16, zero-padding the tail.
    Zero frames contribute zero to the pooled sum, so padding does not bias
    the cosine similarity."""
    wav = jnp.asarray(wav, jnp.float32).reshape(-1)
    total = n_frames * FRAME
    wav = jnp.pad(wav, (0, total - wav.shape[0]))
    return wav.reshape(n_frames, FRAME).astype(jnp.bfloat16)


def _bucket_blocks(sample_counts):
    """Power-of-two block-count bucket covering all waveforms (bounds the jit
    cache: a new compile only happens when the bucket changes)."""
    nf = 1
    for n in sample_counts:
        nf = max(nf, pl.cdiv(int(n), FRAME))
    return int(pl.next_power_of_2(pl.cdiv(nf, BLK)))


class SimComputer:
    """Synthetic speaker-similarity model: deterministic linear frame embedder
    + sum pooling + cosine similarity, executed in one batched Pallas kernel."""

    def __init__(self):
        key = jax.random.PRNGKey(42)
        self.w = (jax.random.normal(key, (FRAME, EMB), dtype=jnp.float32)
                  / jnp.sqrt(jnp.float32(FRAME)))

    def compute_batch(self, pairs):
        """pairs: list of (wav_a, wav_b).  One kernel launch for all pairs."""
        n_blocks = _bucket_blocks(
            [a.shape[0] for a, _ in pairs] + [b.shape[0] for _, b in pairs])
        n_frames = n_blocks * BLK
        a_frames = jnp.stack([_frame(a, n_frames) for a, _ in pairs])
        b_frames = jnp.stack([_frame(b, n_frames) for _, b in pairs])
        sims = jax.device_get(_pairwise_cosine_sim(a_frames, b_frames, self.w))
        return [float(s) for s in sims]

    def __call__(self, wav_a, sr_a, wav_b, sr_b):
        return self.compute_batch([(wav_a, wav_b)])[0]


class QualityComputer:
    """JAX/Pallas port of the numeric part of QualityComputer.forward."""

    def __init__(self, target_sr=16000):
        self.target_sr = target_sr
        self.sim_computer = None
        # TODO(synk): asr_computer / fad / mcd_toolbox are external pretrained
        #             models with no in-script Pallas equivalent.

    def load_assessment_models(self):
        self.sim_computer = SimComputer()

    def forward(self, wav, sr, text, gen_wav, gen_sr):
        if self.sim_computer is None:
            self.load_assessment_models()
        # TODO(synk): real_wer / real_cer / gen_wer / gen_cer need ASR text.
        wav_len = wav.shape[0]
        sim, sim_gt = self.sim_computer.compute_batch([
            (wav, gen_wav),
            (wav[: wav_len // 2], wav[wav_len // 2:]),
        ])
        metrics = {
            "sim": round(sim, 4),
            "sim_gt": round(sim_gt, 4),
        }
        return metrics

    __call__ = forward


if __name__ == "__main__":
    key = jax.random.PRNGKey(0)
    k_wav, k_gen = jax.random.split(key)
    sr = 16000
    # small, deterministic example waveforms (16 frames each)
    wav = jax.random.normal(k_wav, (2048,), dtype=jnp.float32)
    gen_wav = jax.random.normal(k_gen, (2048,), dtype=jnp.float32)
    text = "hey how are you doing today"

    qc = QualityComputer(target_sr=sr)
    metrics = qc(wav, sr, text, gen_wav, sr)

    # also run the kernel directly and block on its result
    n_blocks = _bucket_blocks([wav.shape[0], gen_wav.shape[0]])
    n_frames = n_blocks * BLK
    a = jnp.stack([_frame(wav, n_frames), _frame(wav[:1024], n_frames)])
    b = jnp.stack([_frame(gen_wav, n_frames), _frame(wav[1024:], n_frames)])
    out = _pairwise_cosine_sim(a, b, qc.sim_computer.w)
    jax.block_until_ready(out)

    assert -1.0001 <= metrics["sim"] <= 1.0001
    assert -1.0001 <= metrics["sim_gt"] <= 1.0001
    print("KERNEL_OK")
</pallas_src>

<mosaic_0001>
module attributes {stable_mosaic.version = 11 : i64} {
  func.func @_sim_kernel(%arg0: i32, %arg1: i32, %arg2: memref<1x1024x128xbf16, #tpu.memory_space<vmem>>, %arg3: memref<1x1024x128xbf16, #tpu.memory_space<vmem>>, %arg4: memref<128x128xf32, #tpu.memory_space<vmem>>, %arg5: memref<1x8x128xf32, #tpu.memory_space<vmem>>, %arg6: memref<8x128xf32, #tpu.memory_space<vmem>>, %arg7: memref<8x128xf32, #tpu.memory_space<vmem>>) attributes {dimension_semantics = [#tpu.dimension_semantics<parallel>, #tpu.dimension_semantics<arbitrary>], iteration_bounds = array<i64: 2, 1>, scalar_prefetch = 0 : i64, scratch_operands = 2 : i64, tpu.core_type = #tpu.core_type<tc>, window_params = [{transform_indices = @transform_0, window_bounds = array<i64: 1, 1024, 128>}, {transform_indices = @transform_1, window_bounds = array<i64: 1, 1024, 128>}, {pipeline_mode = #tpu.pipeline_mode<synchronous>, transform_indices = @transform_2, window_bounds = array<i64: 128, 128>}, {transform_indices = @transform_3, window_bounds = array<i64: 1, 8, 128>}]} {
    %c0_i32 = arith.constant 0 : i32
    %0 = arith.cmpi eq, %arg1, %c0_i32 : i32
    %1 = arith.extui %0 : i1 to i32
    %c0_i32_0 = arith.constant 0 : i32
    %2 = arith.cmpi ne, %1, %c0_i32_0 : i32
    scf.if %2 {
      %cst_17 = arith.constant 0.000000e+00 : f32
      %22 = vector.broadcast %cst_17 : f32 to vector<8x128xf32>
      %c0_18 = arith.constant 0 : index
      %c0_19 = arith.constant 0 : index
      %23 = vector.load %arg6[%c0_18, %c0_19] : memref<8x128xf32, #tpu.memory_space<vmem>>, vector<8x128xf32>
      tpu.vector_store %arg6[%c0_18, %c0_19], %22 {strides = array<i32>} : memref<8x128xf32, #tpu.memory_space<vmem>>, vector<8x128xf32>,
      %cst_20 = arith.constant 0.000000e+00 : f32
      %24 = vector.broadcast %cst_20 : f32 to vector<8x128xf32>
      %c0_21 = arith.constant 0 : index
      %c0_22 = arith.constant 0 : index
      %25 = vector.load %arg7[%c0_21, %c0_22] : memref<8x128xf32, #tpu.memory_space<vmem>>, vector<8x128xf32>
      tpu.vector_store %arg7[%c0_21, %c0_22], %24 {strides = array<i32>} : memref<8x128xf32, #tpu.memory_space<vmem>>, vector<8x128xf32>,
    } else {
    }
    %c0 = arith.constant 0 : index
    %c0_1 = arith.constant 0 : index
    %c0_2 = arith.constant 0 : index
    %3 = vector.load %arg2[%c0, %c0_1, %c0_2] : memref<1x1024x128xbf16, #tpu.memory_space<vmem>>, vector<1x1024x128xbf16>
    %4 = vector.shape_cast %3 : vector<1x1024x128xbf16> to vector<1024x128xbf16>
    %5 = arith.extf %4 : vector<1024x128xbf16> to vector<1024x128xf32>
    %6 = vector.shape_cast %5 : vector<1024x128xf32> to vector<128x8x128xf32>
    %c0_3 = arith.constant 0 : index
    %c0_4 = arith.constant 0 : index
    %c0_5 = arith.constant 0 : index
    %7 = vector.load %arg3[%c0_3, %c0_4, %c0_5] : memref<1x1024x128xbf16, #tpu.memory_space<vmem>>, vector<1x1024x128xbf16>
    %8 = vector.shape_cast %7 : vector<1x1024x128xbf16> to vector<1024x128xbf16>
    %9 = arith.extf %8 : vector<1024x128xbf16> to vector<1024x128xf32>
    %10 = vector.shape_cast %9 : vector<1024x128xf32> to vector<128x8x128xf32>
    %c0_6 = arith.constant 0 : index
    %c0_7 = arith.constant 0 : index
    %11 = vector.load %arg6[%c0_6, %c0_7] : memref<8x128xf32, #tpu.memory_space<vmem>>, vector<8x128xf32>
    %cst = arith.constant dense<0.000000e+00> : vector<8x128xf32>
    %12 = vector.multi_reduction <add>, %6, %cst [0] : vector<128x8x128xf32> to vector<8x128xf32>
    %13 = arith.addf %11, %12 : vector<8x128xf32>
    %c0_8 = arith.constant 0 : index
    %c0_9 = arith.constant 0 : index
    %14 = vector.load %arg6[%c0_8, %c0_9] : memref<8x128xf32, #tpu.memory_space<vmem>>, vector<8x128xf32>
    tpu.vector_store %arg6[%c0_8, %c0_9], %13 {strides = array<i32>} : memref<8x128xf32, #tpu.memory_space<vmem>>, vector<8x128xf32>,
    %c0_10 = arith.constant 0 : index
    %c0_11 = arith.constant 0 : index
    %15 = vector.load %arg7[%c0_10, %c0_11] : memref<8x128xf32, #tpu.memory_space<vmem>>, vector<8x128xf32>
    %cst_12 = arith.constant dense<0.000000e+00> : vector<8x128xf32>
    %16 = vector.multi_reduction <add>, %10, %cst_12 [0] : vector<128x8x128xf32> to vector<8x128xf32>
    %17 = arith.addf %15, %16 : vector<8x128xf32>
    %c0_13 = arith.constant 0 : index
    %c0_14 = arith.constant 0 : index
    %18 = vector.load %arg7[%c0_13, %c0_14] : memref<8x128xf32, #tpu.memory_space<vmem>>, vector<8x128xf32>
    tpu.vector_store %arg7[%c0_13, %c0_14], %17 {strides = array<i32>} : memref<8x128xf32, #tpu.memory_space<vmem>>, vector<8x128xf32>,
    %c0_i32_15 = arith.constant 0 : i32
    %19 = arith.cmpi eq, %arg1, %c0_i32_15 : i32
    %20 = arith.extui %19 : i1 to i32
    %c0_i32_16 = arith.constant 0 : i32
    %21 = arith.cmpi ne, %20, %c0_i32_16 : i32
    scf.if %21 {
      %c0_17 = arith.constant 0 : index
      %c0_18 = arith.constant 0 : index
      %22 = vector.load %arg6[%c0_17, %c0_18] : memref<8x128xf32, #tpu.memory_space<vmem>>, vector<8x128xf32>
      %c0_19 = arith.constant 0 : index
      %c0_20 = arith.constant 0 : index
      %23 = vector.load %arg4[%c0_19, %c0_20] : memref<128x128xf32, #tpu.memory_space<vmem>>, vector<128x128xf32>
      %cst_21 = arith.constant dense<0.000000e+00> : vector<8x128xf32>
      %24 = tpu.matmul %22, %23, %cst_21 {dimension_numbers = #tpu.dot_dimension_numbers<[1], [0], [0], [1], [0, 0, 1, 1], [], []>} : vector<8x128xf32>, vector<128x128xf32>, vector<8x128xf32> -> vector<8x128xf32>
      %cst_22 = arith.constant dense<0.000000e+00> : vector<128xf32>
      %25 = vector.multi_reduction <add>, %24, %cst_22 [0] : vector<8x128xf32> to vector<128xf32>
      %26 = vector.shape_cast %25 : vector<128xf32> to vector<1x128xf32>
      %c0_23 = arith.constant 0 : index
      %c0_24 = arith.constant 0 : index
      %27 = vector.load %arg7[%c0_23, %c0_24] : memref<8x128xf32, #tpu.memory_space<vmem>>, vector<8x128xf32>
      %c0_25 = arith.constant 0 : index
      %c0_26 = arith.constant 0 : index
      %28 = vector.load %arg4[%c0_25, %c0_26] : memref<128x128xf32, #tpu.memory_space<vmem>>, vector<128x128xf32>
      %cst_27 = arith.constant dense<0.000000e+00> : vector<8x128xf32>
      %29 = tpu.matmul %27, %28, %cst_27 {dimension_numbers = #tpu.dot_dimension_numbers<[1], [0], [0], [1], [0, 0, 1, 1], [], []>} : vector<8x128xf32>, vector<128x128xf32>, vector<8x128xf32> -> vector<8x128xf32>
      %cst_28 = arith.constant dense<0.000000e+00> : vector<128xf32>
      %30 = vector.multi_reduction <add>, %29, %cst_28 [0] : vector<8x128xf32> to vector<128xf32>
      %31 = vector.shape_cast %30 : vector<128xf32> to vector<1x128xf32>
      %32 = arith.mulf %26, %31 : vector<1x128xf32>
      %33 = vector.shape_cast %32 : vector<1x128xf32> to vector<1x1x128xf32>
      %cst_29 = arith.constant dense<0.000000e+00> : vector<1xf32>
      %34 = vector.multi_reduction <add>, %33, %cst_29 [1, 2] : vector<1x1x128xf32> to vector<1xf32>
      %35 = vector.shape_cast %34 : vector<1xf32> to vector<1x1x1xf32>
      %36 = vector.extract %35[0, 0, 0] : f32 from vector<1x1x1xf32>
      %37 = arith.mulf %26, %26 : vector<1x128xf32>
      %38 = vector.shape_cast %37 : vector<1x128xf32> to vector<1x1x128xf32>
      %cst_30 = arith.constant dense<0.000000e+00> : vector<1xf32>
      %39 = vector.multi_reduction <add>, %38, %cst_30 [1, 2] : vector<1x1x128xf32> to vector<1xf32>
      %40 = vector.shape_cast %39 : vector<1xf32> to vector<1x1x1xf32>
      %41 = vector.extract %40[0, 0, 0] : f32 from vector<1x1x1xf32>
      %42 = arith.mulf %31, %31 : vector<1x128xf32>
      %43 = vector.shape_cast %42 : vector<1x128xf32> to vector<1x1x128xf32>
      %cst_31 = arith.constant dense<0.000000e+00> : vector<1xf32>
      %44 = vector.multi_reduction <add>, %43, %cst_31 [1, 2] : vector<1x1x128xf32> to vector<1xf32>
      %45 = vector.shape_cast %44 : vector<1xf32> to vector<1x1x1xf32>
      %46 = vector.extract %45[0, 0, 0] : f32 from vector<1x1x1xf32>
      %47 = arith.mulf %41, %46 : f32
      %cst_32 = arith.constant 9.99999996E-13 : f32
      %48 = arith.addf %47, %cst_32 : f32
      %49 = math.rsqrt %48 : f32
      %50 = arith.mulf %36, %49 : f32
      %cst_33 = arith.constant 1.000000e+00 : f32
      %51 = vector.broadcast %cst_33 : f32 to vector<1x8x128xf32>
      %52 = vector.broadcast %50 : f32 to vector<1x8x128xf32>
      %53 = arith.mulf %52, %51 : vector<1x8x128xf32>
      %c0_34 = arith.constant 0 : index
      %c0_35 = arith.constant 0 : index
      %c0_36 = arith.constant 0 : index
      %54 = vector.load %arg5[%c0_34, %c0_35, %c0_36] : memref<1x8x128xf32, #tpu.memory_space<vmem>>, vector<1x8x128xf32>
      tpu.vector_store %arg5[%c0_34, %c0_35, %c0_36], %53 {strides = array<i32>} : memref<1x8x128xf32, #tpu.memory_space<vmem>>, vector<1x8x128xf32>,
    } else {
    }
    return
  }
  func.func @transform_0(%arg0: i32, %arg1: i32) -> (i32, i32, i32) {
    %c0_i32 = arith.constant 0 : i32
    %c0_i32_0 = arith.constant 0 : i32
    return %arg0, %arg1, %c0_i32 : i32, i32, i32
  }
  func.func @transform_1(%arg0: i32, %arg1: i32) -> (i32, i32, i32) {
    %c0_i32 = arith.constant 0 : i32
    %c0_i32_0 = arith.constant 0 : i32
    return %arg0, %arg1, %c0_i32 : i32, i32, i32
  }
  func.func @transform_2(%arg0: i32, %arg1: i32) -> (i32, i32) {
    %c0_i32 = arith.constant 0 : i32
    %c0_i32_0 = arith.constant 0 : i32
    %c0_i32_1 = arith.constant 0 : i32
    return %c0_i32, %c0_i32_0 : i32, i32
  }
  func.func @transform_3(%arg0: i32, %arg1: i32) -> (i32, i32, i32) {
    %c0_i32 = arith.constant 0 : i32
    %c0_i32_0 = arith.constant 0 : i32
    %c0_i32_1 = arith.constant 0 : i32
    return %arg0, %c0_i32, %c0_i32_0 : i32, i32, i32
  }
}

</mosaic_0001>

<llo_original>
// kernel: _pairwise_cosine_sim.1
$region0: #{_pairwise_cosine_sim.1}
  #allocation0 [shape = 'u32[]', space=smem, size = 0x4, offset = 0x4, fixed_abs, tag = 'smem constant byte address 0x4 - core index']
  #allocation1 [shape = 'u32[144,128]{1,0:T(1,128)}', space=vmem, size = 0x12000, scoped, tag = 'internal scratch']
  #allocation2 [shape = 'f32[8,128]{1,0:T(8,128)}', space=vmem, size = 0x1000, scoped, tag = 'scratch operand']
  #allocation3 [shape = 'f32[8,128]{1,0:T(8,128)}', space=vmem, size = 0x1000, scoped, tag = 'scratch operand']
  %s0 = inlined_call_operand.hbm [shape: bf16[2,1024,128], index: 0, kind: input, shape index: {}]
  %s1 = inlined_call_operand.hbm [shape: bf16[2,1024,128], index: 1, kind: input, shape index: {}]
  %s2 = inlined_call_operand.hbm [shape: f32[128,128], index: 2, kind: input, shape index: {}]
  %s3 = inlined_call_operand.vmem [shape: f32[2,8,128], index: 3, kind: output, shape index: {}]
  %s4 = sld [smem:[#allocation0]]
  $region65: #{_pairwise_cosine_sim.1} parent=0
    _
  %s6 = ssub.s32 1, %s4
  %s7 = scalar_select 0, %s6, %s4
  $region1: #{_pairwise_cosine_sim.1} parent=0
    #allocation4 [shape = 'u8[524288]{0}', space=vmem, size = 0x80000, scoped, tag = 'input window, operand 0']
    #allocation5 [shape = 's32[2]{0}', space=sflag, size = 0x8, scoped, tag = 'scoped memory for _pairwise_cosine_sim.1']
    #allocation6 [shape = 'u8[524288]{0}', space=vmem, size = 0x80000, scoped, tag = 'input window, operand 1']
    #allocation7 [shape = 's32[2]{0}', space=sflag, size = 0x8, scoped, tag = 'scoped memory for _pairwise_cosine_sim.1']
    #allocation8 [shape = 'u8[65536]{0}', space=vmem, size = 0x10000, scoped, tag = 'input window, operand 2, single buffered']
    %8 = vsyncpa [#allocation5], 0
    %s9 = scalar_lea.sflag [#allocation5], 1
    %10 = vsyncpa %s9, 0
    %11 = vsyncpa [#allocation7], 0
    %s12 = scalar_lea.sflag [#allocation7], 1
    %13 = vsyncpa %s12, 0
    loop: start=0, step=1, limit=4
    $region2: #{_pairwise_cosine_sim.1} parent=1 // loop_pre_header
      _
    $region3: #{_pairwise_cosine_sim.1} parent=1 // loop_header
      %s15 = sphi 0, %s19
      %p16 = scmp.ge.s32.totalorder %s15, 4
      %s22 = sphi 0, %s34
      %s23 = sphi 0, %s30
      %s24 = sphi 0, %s22
      %s25 = sphi 0, %s23
      %s26 = sphi 0, %s24
      %s27 = sphi 0, %s25
      %s39 = sphi 0, %s41
      %s42 = sphi 0, %s39
      %s43 = sphi 0, %s42
      %s59 = sphi 0, %s43
      %s67 = sphi 0, %s69
      %s70 = sphi 0, %s67
      %s71 = sphi 0, %s70
      %s87 = sphi 0, %s71
      %s91 = sphi 0, %s91
      %s93 = sphi 0, %s91
      %s94 = sphi 0, %s93
      %s108 = sphi 0, %s94
      %s114 = sphi 0, %s116
      %s117 = sphi 0, %s114
      %s118 = sphi 0, %s117
      %s134 = sphi 0, %s118
    $region4: #{_pairwise_cosine_sim.1} parent=1 // loop_header_branch
      %18 = sbr.rel (%p16) target = $region8
    $region5: #{_pairwise_cosine_sim.1} parent=1 // loop_body
      %s20 = ssub.s32 %s15, 1
      %s21 = ssub.s32 %s15, 2
      %s28 = sadd.s32 1, %s23
      %p29 = scmp.ge.s32.totalorder %s28, 1
      %s30 = scalar_select %p29, 0, %s28
      %s31 = sadd.s32 1, %s22
      %s32 = scalar_select %p29, %s31, %s22
      %p33 = scmp.ge.s32.totalorder %s32, 2
      %s34 = scalar_select %p33, 0, %s32
      %s35 = ssub.s32 %s22, %s34
      %s36 = ssub.s32 %s23, %s30
      %s37 = sor.u32 %s35, %s36
      %p38 = scmp.eq.s32.totalorder %s37, 0
      %s40 = sadd.s32 %s39, 1
      %s41 = scalar_select %p38, %s39, %s40
      %p44 = pneg %p38
      %p45 = scmp.eq.s32.totalorder %s15, 1
      %p46 = por %p44, %p45
      %p47 = scmp.ne.s32.totalorder %s39, %s42
      %p48 = scmp.eq.s32.totalorder %s15, 0
      %p49 = por %p47, %p48
      %p50 = scmp.ne.s32.totalorder %s39, %s42
      %p51 = scmp.eq.s32.totalorder %s20, 1
      %p52 = por %p50, %p51
      %p53 = scmp.ne.s32.totalorder %s42, %s43
      %p54 = scmp.eq.s32.totalorder %s20, 0
      %p55 = por %p53, %p54
      %p56 = scmp.ne.s32.totalorder %s42, %s43
      %p57 = scmp.eq.s32.totalorder %s21, 1
      %p58 = por %p56, %p57
      %p60 = scmp.ne.s32.totalorder %s43, %s59
      %p61 = scmp.eq.s32.totalorder %s21, 0
      %p62 = por %p60, %p61
      %s63 = ssub.s32 %s22, %s34
      %s64 = ssub.s32 %s23, %s30
      %s65 = sor.u32 %s63, %s64
      %p66 = scmp.eq.s32.totalorder %s65, 0
      %s68 = sadd.s32 %s67, 1
      %s69 = scalar_select %p66, %s67, %s68
      %p72 = pneg %p66
      %p73 = scmp.eq.s32.totalorder %s15, 1
      %p74 = por %p72, %p73
      %p75 = scmp.ne.s32.totalorder %s67, %s70
      %p76 = scmp.eq.s32.totalorder %s15, 0
      %p77 = por %p75, %p76
      %p78 = scmp.ne.s32.totalorder %s67, %s70
      %p79 = scmp.eq.s32.totalorder %s20, 1
      %p80 = por %p78, %p79
      %p81 = scmp.ne.s32.totalorder %s70, %s71
      %p82 = scmp.eq.s32.totalorder %s20, 0
      %p83 = por %p81, %p82
      %p84 = scmp.ne.s32.totalorder %s70, %s71
      %p85 = scmp.eq.s32.totalorder %s21, 1
      %p86 = por %p84, %p85
      %p88 = scmp.ne.s32.totalorder %s71, %s87
      %p89 = scmp.eq.s32.totalorder %s21, 0
      %p90 = por %p88, %p89
      %s92 = sadd.s32 %s91, 1
      %p95 = scmp.eq.s32.totalorder %s15, 1
      %p96 = scmp.ne.s32.totalorder %s91, %s93
      %p97 = scmp.eq.s32.totalorder %s15, 0
      %p98 = por %p96, %p97
      %p99 = scmp.ne.s32.totalorder %s91, %s93
      %p100 = scmp.eq.s32.totalorder %s20, 1
      %p101 = por %p99, %p100
      %p102 = scmp.ne.s32.totalorder %s93, %s94
      %p103 = scmp.eq.s32.totalorder %s20, 0
      %p104 = por %p102, %p103
      %p105 = scmp.ne.s32.totalorder %s93, %s94
      %p106 = scmp.eq.s32.totalorder %s21, 1
      %p107 = por %p105, %p106
      %p109 = scmp.ne.s32.totalorder %s94, %s108
      %p110 = scmp.eq.s32.totalorder %s21, 0
      %p111 = por %p109, %p110
      %s112 = ssub.s32 %s22, %s34
      %p113 = scmp.eq.s32.totalorder %s112, 0
      %s115 = sadd.s32 %s114, 1
      %s116 = scalar_select %p113, %s114, %s115
      %p119 = pneg %p113
      %p120 = scmp.eq.s32.totalorder %s15, 1
      %p121 = por %p119, %p120
      %p122 = scmp.ne.s32.totalorder %s114, %s117
      %p123 = scmp.eq.s32.totalorder %s15, 0
      %p124 = por %p122, %p123
      %p125 = scmp.ne.s32.totalorder %s114, %s117
      %p126 = scmp.eq.s32.totalorder %s20, 1
      %p127 = por %p125, %p126
      %p128 = scmp.ne.s32.totalorder %s117, %s118
      %p129 = scmp.eq.s32.totalorder %s20, 0
      %p130 = por %p128, %p129
      %p131 = scmp.ne.s32.totalorder %s117, %s118
      %p132 = scmp.eq.s32.totalorder %s21, 1
      %p133 = por %p131, %p132
      %p135 = scmp.ne.s32.totalorder %s118, %s134
      %p136 = scmp.eq.s32.totalorder %s21, 0
      %p137 = por %p135, %p136
      %p138 = scmp.le.s32.totalorder 1, %s15
      %p139 = scmp.lt.s32.totalorder %s15, 3
      %p140 = pnand %p138, %p139
      %p141 = pneg %p140
      // Predicated region
      $region9: #{_pairwise_cosine_sim.1} parent=5 // pred_check
        _
      $region10: #{_pairwise_cosine_sim.1} parent=5 // pred_check_branch
        %143 = sbr.rel (%p140) target = $region12
      $region11: #{_pairwise_cosine_sim.1} parent=5 // pred_region
        %s144 = ssub.s32 %s15, 1
        // Predicated region
        $region13: #{_pairwise_cosine_sim.1} parent=11 // pred_check
          %p145 = pneg %p104
        $region14: #{_pairwise_cosine_sim.1} parent=11 // pred_check_branch
          %147 = sbr.rel (%p145) target = $region16
        $region15: #{_pairwise_cosine_sim.1} parent=11 // pred_region
          %s149 = ssub.s32 2048, 2048
          %150 = vsyncadd [#allocation7], %s149
          %s151 = sshll.u32 [#allocation8], 4
          %s152 = int_to_ptr.vmem [resolvable:$true] %s151
          %157 = dma.hbm_to_vmem [thread:$0]  %s2, 2048, %s152, [#allocation7], 128, 128, 8
        $region16: #{_pairwise_cosine_sim.1} parent=11 // pred_fallthru
          _
      $region12: #{_pairwise_cosine_sim.1} parent=5 // pred_fallthru
        _
      %p158 = scmp.lt.s32.totalorder %s15, 2
      // Predicated region
      $region17: #{_pairwise_cosine_sim.1} parent=5 // pred_check
        %p159 = pneg %p158
      $region18: #{_pairwise_cosine_sim.1} parent=5 // pred_check_branch
        %161 = sbr.rel (%p159) target = $region20
      $region19: #{_pairwise_cosine_sim.1} parent=5 // pred_region
        // Predicated region
        $region21: #{_pairwise_cosine_sim.1} parent=19 // pred_check
          %p162 = pneg %p49
        $region22: #{_pairwise_cosine_sim.1} parent=19 // pred_check_branch
          %164 = sbr.rel (%p162) target = $region24
        $region23: #{_pairwise_cosine_sim.1} parent=19 // pred_region
          %s165 = sand.u32 %s39, 1
          %s166 = scalar_lea.sflag [#allocation5], %s165
          %s167 = sand.u32 %s39, 1
          %s168 = smul.addr %s167, 512
          %s169 = scalar_lea.vmem [#allocation4], %s168
          %s170 = smul.u32 128, %s23
          %s172 = ssub.s32 8192, 8192
          %173 = vsyncadd %s166, %s172
          %s174 = smul.addr %s22, 128
          %s175 = sadd.s32 %s170, %s174
          %s176 = smul.addr %s175, 64
          %s177 = scalar_lea.hbm %s0, %s176
          %s178 = sshll.u32 %s169, 4
          %s179 = int_to_ptr.vmem [resolvable:$true] %s178
          %184 = dma.hbm_to_vmem [thread:$0]  %s177, 8192, %s179, %s166, 64, 64, 4
        $region24: #{_pairwise_cosine_sim.1} parent=19 // pred_fallthru
          _
        // Predicated region
        $region25: #{_pairwise_cosine_sim.1} parent=19 // pred_check
          %p185 = pneg %p77
        $region26: #{_pairwise_cosine_sim.1} parent=19 // pred_check_branch
          %187 = sbr.rel (%p185) target = $region28
        $region27: #{_pairwise_cosine_sim.1} parent=19 // pred_region
          %s188 = sand.u32 %s15, 1
          %s189 = scalar_lea.sflag [#allocation7], %s188
          %s190 = sand.u32 %s67, 1
          %s191 = smul.addr %s190, 512
          %s192 = scalar_lea.vmem [#allocation6], %s191
          %s193 = smul.u32 128, %s23
          %s195 = ssub.s32 8192, 8192
          %196 = vsyncadd %s189, %s195
          %s197 = smul.addr %s22, 128
          %s198 = sadd.s32 %s193, %s197
          %s199 = smul.addr %s198, 64
          %s200 = scalar_lea.hbm %s1, %s199
          %s201 = sshll.u32 %s192, 4
          %s202 = int_to_ptr.vmem [resolvable:$true] %s201
          %207 = dma.hbm_to_vmem [thread:$0]  %s200, 8192, %s202, %s189, 64, 64, 4
        $region28: #{_pairwise_cosine_sim.1} parent=19 // pred_fallthru
          _
      $region20: #{_pairwise_cosine_sim.1} parent=5 // pred_fallthru
        _
      %p208 = scmp.le.s32.totalorder 1, %s15
      %p209 = scmp.lt.s32.totalorder %s15, 3
      %p210 = pnand %p208, %p209
      %p211 = pneg %p210
      // Predicated region
      $region29: #{_pairwise_cosine_sim.1} parent=5 // pred_check
        _
      $region30: #{_pairwise_cosine_sim.1} parent=5 // pred_check_branch
        %213 = sbr.rel (%p210) target = $region32
      $region31: #{_pairwise_cosine_sim.1} parent=5 // pred_region
        %s214 = ssub.s32 %s15, 1
        %s215 = sand.u32 %s42, 1
        %s216 = scalar_lea.sflag [#allocation5], %s215
        %s217 = sand.u32 %s42, 1
        %s218 = smul.addr %s217, 512
        %s219 = scalar_lea.vmem [#allocation4], %s218
        // Predicated region
        $region33: #{_pairwise_cosine_sim.1} parent=31 // pred_check
          %p220 = pneg %p55
        $region34: #{_pairwise_cosine_sim.1} parent=31 // pred_check_branch
          %222 = sbr.rel (%p220) target = $region36
        $region35: #{_pairwise_cosine_sim.1} parent=31 // pred_region
          %223 = dma.done %s216, 8192
        $region36: #{_pairwise_cosine_sim.1} parent=31 // pred_fallthru
          _
        %s224 = sand.u32 %s20, 1
        %s225 = scalar_lea.sflag [#allocation7], %s224
        %s226 = sand.u32 %s70, 1
        %s227 = smul.addr %s226, 512
        %s228 = scalar_lea.vmem [#allocation6], %s227
        // Predicated region
        $region37: #{_pairwise_cosine_sim.1} parent=31 // pred_check
          %p229 = pneg %p83
        $region38: #{_pairwise_cosine_sim.1} parent=31 // pred_check_branch
          %231 = sbr.rel (%p229) target = $region40
        $region39: #{_pairwise_cosine_sim.1} parent=31 // pred_region
          %232 = dma.done %s225, 8192
        $region40: #{_pairwise_cosine_sim.1} parent=31 // pred_fallthru
          _
        // Predicated region
        $region41: #{_pairwise_cosine_sim.1} parent=31 // pred_check
          %p233 = pneg %p104
        $region42: #{_pairwise_cosine_sim.1} parent=31 // pred_check_branch
          %235 = sbr.rel (%p233) target = $region44
        $region43: #{_pairwise_cosine_sim.1} parent=31 // pred_region
          %236 = dma.done [#allocation7], 2048
        $region44: #{_pairwise_cosine_sim.1} parent=31 // pred_fallthru
          _
        %s237 = sand.u32 %s42, 1
        %s238 = scalar_lea.sflag [#allocation5], %s237
        %s239 = sand.u32 %s42, 1
        %s240 = smul.addr %s239, 512
        %s241 = scalar_lea.vmem [#allocation4], %s240
        %p242 = pneg %p55
        %p243 = pneg %p52
        %s244 = sand.u32 %s20, 1
        %s245 = scalar_lea.sflag [#allocation7], %s244
        %s246 = sand.u32 %s70, 1
        %s247 = smul.addr %s246, 512
        %s248 = scalar_lea.vmem [#allocation6], %s247
        %p249 = pneg %p83
        %p250 = pneg %p80
        %p251 = pneg %p104
        %p252 = pneg %p101
        %p253 = pneg %p130
        %p254 = pneg %p127
        %p255 = scmp.lt.s32.totalorder %s24, 1
        %s256 = scalar_select %p255, %s24, 1
        %s257 = smul.addr %s256, 8
        %s258 = scalar_lea.vmem %s3, %s257
        %s259 = smul.u32 128, %s25
        %s260 = smul.u32 128, %s25
        %p261 = scmp.lt.s32.totalorder %s24, 1
        %s262 = scalar_select %p261, %s24, 1
        %s263 = smul.addr %s262, 8
        %s264 = scalar_lea.vmem %s3, %s263
        %p265 = scmp.eq.s32.totalorder %s25, 0
        // Predicated region
        $region45: #{_pairwise_cosine_sim.1} parent=31 // pred_check
          %p266 = pneg %p265
        $region46: #{_pairwise_cosine_sim.1} parent=31 // pred_check_branch
          %268 = sbr.rel (%p266) target = $region48
        $region47: #{_pairwise_cosine_sim.1} parent=31 // pred_region
          %269 = vst [vmem:[#allocation2] sm:$0xff] 0.0
          %270 = vst [vmem:[#allocation3] sm:$0xff] 0.0
        $region48: #{_pairwise_cosine_sim.1} parent=31 // pred_fallthru
          _
        %v271 = vld [vmem:[%s219] sm:$0xf]
        %v272 = vld [vmem:[%s219 + $0x4] sm:$0xf]
        %v273 = vld [vmem:[%s219 + $0x8] sm:$0xf]
        %v274 = vld [vmem:[%s219 + $0xc] sm:$0xf]
        %v275 = vld [vmem:[%s219 + $0x10] sm:$0xf]
        %v276 = vld [vmem:[%s219 + $0x14] sm:$0xf]
        %v277 = vld [vmem:[%s219 + $0x18] sm:$0xf]
        %v278 = vld [vmem:[%s219 + $0x1c] sm:$0xf]
        %v279 = vld [vmem:[%s219 + $0x20] sm:$0xf]
        %v280 = vld [vmem:[%s219 + $0x24] sm:$0xf]
        %v281 = vld [vmem:[%s219 + $0x28] sm:$0xf]
        %v282 = vld [vmem:[%s219 + $0x2c] sm:$0xf]
        %v283 = vld [vmem:[%s219 + $0x30] sm:$0xf]
        %v284 = vld [vmem:[%s219 + $0x34] sm:$0xf]
        %v285 = vld [vmem:[%s219 + $0x38] sm:$0xf]
        %v286 = vld [vmem:[%s219 + $0x3c] sm:$0xf]
        %v287 = vld [vmem:[%s219 + $0x40] sm:$0xf]
        %v288 = vld [vmem:[%s219 + $0x44] sm:$0xf]
        %v289 = vld [vmem:[%s219 + $0x48] sm:$0xf]
        %v290 = vld [vmem:[%s219 + $0x4c] sm:$0xf]
        %v291 = vld [vmem:[%s219 + $0x50] sm:$0xf]
        %v292 = vld [vmem:[%s219 + $0x54] sm:$0xf]
        %v293 = vld [vmem:[%s219 + $0x58] sm:$0xf]
        %v294 = vld [vmem:[%s219 + $0x5c] sm:$0xf]
        %v295 = vld [vmem:[%s219 + $0x60] sm:$0xf]
        %v296 = vld [vmem:[%s219 + $0x64] sm:$0xf]
        %v297 = vld [vmem:[%s219 + $0x68] sm:$0xf]
        %v298 = vld [vmem:[%s219 + $0x6c] sm:$0xf]
        %v299 = vld [vmem:[%s219 + $0x70] sm:$0xf]
        %v300 = vld [vmem:[%s219 + $0x74] sm:$0xf]
        %v301 = vld [vmem:[%s219 + $0x78] sm:$0xf]
        %v302 = vld [vmem:[%s219 + $0x7c] sm:$0xf]
        %v303 = vld [vmem:[%s219 + $0x80] sm:$0xf]
        %v304 = vld [vmem:[%s219 + $0x84] sm:$0xf]
        %v305 = vld [vmem:[%s219 + $0x88] sm:$0xf]
        %v306 = vld [vmem:[%s219 + $0x8c] sm:$0xf]
        %v307 = vld [vmem:[%s219 + $0x90] sm:$0xf]
        %v308 = vld [vmem:[%s219 + $0x94] sm:$0xf]
        %v309 = vld [vmem:[%s219 + $0x98] sm:$0xf]
        %v310 = vld [vmem:[%s219 + $0x9c] sm:$0xf]
        %v311 = vld [vmem:[%s219 + $0xa0] sm:$0xf]
        %v312 = vld [vmem:[%s219 + $0xa4] sm:$0xf]
        %v313 = vld [vmem:[%s219 + $0xa8] sm:$0xf]
        %v314 = vld [vmem:[%s219 + $0xac] sm:$0xf]
        %v315 = vld [vmem:[%s219 + $0xb0] sm:$0xf]
        %v316 = vld [vmem:[%s219 + $0xb4] sm:$0xf]
        %v317 = vld [vmem:[%s219 + $0xb8] sm:$0xf]
        %v318 = vld [vmem:[%s219 + $0xbc] sm:$0xf]
        %v319 = vld [vmem:[%s219 + $0xc0] sm:$0xf]
        %v320 = vld [vmem:[%s219 + $0xc4] sm:$0xf]
        %v321 = vld [vmem:[%s219 + $0xc8] sm:$0xf]
        %v322 = vld [vmem:[%s219 + $0xcc] sm:$0xf]
        %v323 = vld [vmem:[%s219 + $0xd0] sm:$0xf]
        %v324 = vld [vmem:[%s219 + $0xd4] sm:$0xf]
        %v325 = vld [vmem:[%s219 + $0xd8] sm:$0xf]
        %v326 = vld [vmem:[%s219 + $0xdc] sm:$0xf]
        %v327 = vld [vmem:[%s219 + $0xe0] sm:$0xf]
        %v328 = vld [vmem:[%s219 + $0xe4] sm:$0xf]
        %v329 = vld [vmem:[%s219 + $0xe8] sm:$0xf]
        %v330 = vld [vmem:[%s219 + $0xec] sm:$0xf]
        %v331 = vld [vmem:[%s219 + $0xf0] sm:$0xf]
        %v332 = vld [vmem:[%s219 + $0xf4] sm:$0xf]
        %v333 = vld [vmem:[%s219 + $0xf8] sm:$0xf]
        %v334 = vld [vmem:[%s219 + $0xfc] sm:$0xf]
        %v335 = vld [vmem:[%s219 + $0x100] sm:$0xf]
        %v336 = vld [vmem:[%s219 + $0x104] sm:$0xf]
        %v337 = vld [vmem:[%s219 + $0x108] sm:$0xf]
        %v338 = vld [vmem:[%s219 + $0x10c] sm:$0xf]
        %v339 = vld [vmem:[%s219 + $0x110] sm:$0xf]
        %v340 = vld [vmem:[%s219 + $0x114] sm:$0xf]
        %v341 = vld [vmem:[%s219 + $0x118] sm:$0xf]
        %v342 = vld [vmem:[%s219 + $0x11c] sm:$0xf]
        %v343 = vld [vmem:[%s219 + $0x120] sm:$0xf]
        %v344 = vld [vmem:[%s219 + $0x124] sm:$0xf]
        %v345 = vld [vmem:[%s219 + $0x128] sm:$0xf]
        %v346 = vld [vmem:[%s219 + $0x12c] sm:$0xf]
        %v347 = vld [vmem:[%s219 + $0x130] sm:$0xf]
        %v348 = vld [vmem:[%s219 + $0x134] sm:$0xf]
        %v349 = vld [vmem:[%s219 + $0x138] sm:$0xf]
        %v350 = vld [vmem:[%s219 + $0x13c] sm:$0xf]
        %v351 = vld [vmem:[%s219 + $0x140] sm:$0xf]
        %v352 = vld [vmem:[%s219 + $0x144] sm:$0xf]
        %v353 = vld [vmem:[%s219 + $0x148] sm:$0xf]
        %v354 = vld [vmem:[%s219 + $0x14c] sm:$0xf]
        %v355 = vld [vmem:[%s219 + $0x150] sm:$0xf]
        %v356 = vld [vmem:[%s219 + $0x154] sm:$0xf]
        %v357 = vld [vmem:[%s219 + $0x158] sm:$0xf]
        %v358 = vld [vmem:[%s219 + $0x15c] sm:$0xf]
        %v359 = vld [vmem:[%s219 + $0x160] sm:$0xf]
        %v360 = vld [vmem:[%s219 + $0x164] sm:$0xf]
        %v361 = vld [vmem:[%s219 + $0x168] sm:$0xf]
        %v362 = vld [vmem:[%s219 + $0x16c] sm:$0xf]
        %v363 = vld [vmem:[%s219 + $0x170] sm:$0xf]
        %v364 = vld [vmem:[%s219 + $0x174] sm:$0xf]
        %v365 = vld [vmem:[%s219 + $0x178] sm:$0xf]
        %v366 = vld [vmem:[%s219 + $0x17c] sm:$0xf]
        %v367 = vld [vmem:[%s219 + $0x180] sm:$0xf]
        %v368 = vld [vmem:[%s219 + $0x184] sm:$0xf]
        %v369 = vld [vmem:[%s219 + $0x188] sm:$0xf]
        %v370 = vld [vmem:[%s219 + $0x18c] sm:$0xf]
        %v371 = vld [vmem:[%s219 + $0x190] sm:$0xf]
        %v372 = vld [vmem:[%s219 + $0x194] sm:$0xf]
        %v373 = vld [vmem:[%s219 + $0x198] sm:$0xf]
        %v374 = vld [vmem:[%s219 + $0x19c] sm:$0xf]
        %v375 = vld [vmem:[%s219 + $0x1a0] sm:$0xf]
        %v376 = vld [vmem:[%s219 + $0x1a4] sm:$0xf]
        %v377 = vld [vmem:[%s219 + $0x1a8] sm:$0xf]
        %v378 = vld [vmem:[%s219 + $0x1ac] sm:$0xf]
        %v379 = vld [vmem:[%s219 + $0x1b0] sm:$0xf]
        %v380 = vld [vmem:[%s219 + $0x1b4] sm:$0xf]
        %v381 = vld [vmem:[%s219 + $0x1b8] sm:$0xf]
        %v382 = vld [vmem:[%s219 + $0x1bc] sm:$0xf]
        %v383 = vld [vmem:[%s219 + $0x1c0] sm:$0xf]
        %v384 = vld [vmem:[%s219 + $0x1c4] sm:$0xf]
        %v385 = vld [vmem:[%s219 + $0x1c8] sm:$0xf]
        %v386 = vld [vmem:[%s219 + $0x1cc] sm:$0xf]
        %v387 = vld [vmem:[%s219 + $0x1d0] sm:$0xf]
        %v388 = vld [vmem:[%s219 + $0x1d4] sm:$0xf]
        %v389 = vld [vmem:[%s219 + $0x1d8] sm:$0xf]
        %v390 = vld [vmem:[%s219 + $0x1dc] sm:$0xf]
        %v391 = vld [vmem:[%s219 + $0x1e0] sm:$0xf]
        %v392 = vld [vmem:[%s219 + $0x1e4] sm:$0xf]
        %v393 = vld [vmem:[%s219 + $0x1e8] sm:$0xf]
        %v394 = vld [vmem:[%s219 + $0x1ec] sm:$0xf]
        %v395 = vld [vmem:[%s219 + $0x1f0] sm:$0xf]
        %v396 = vld [vmem:[%s219 + $0x1f4] sm:$0xf]
        %v397 = vld [vmem:[%s219 + $0x1f8] sm:$0xf]
        %v398 = vld [vmem:[%s219 + $0x1fc] sm:$0xf]
        %v399 = vunpack.c.l.bf16 %v271
        %v400 = vunpack.c.l.bf16 %v272
        %v401 = vunpack.c.l.bf16 %v273
        %v402 = vunpack.c.l.bf16 %v274
        %v403 = vunpack.c.l.bf16 %v275
        %v404 = vunpack.c.l.bf16 %v276
        %v405 = vunpack.c.l.bf16 %v277
        %v406 = vunpack.c.l.bf16 %v278
        %v407 = vunpack.c.l.bf16 %v279
        %v408 = vunpack.c.l.bf16 %v280
        %v409 = vunpack.c.l.bf16 %v281
        %v410 = vunpack.c.l.bf16 %v282
        %v411 = vunpack.c.l.bf16 %v283
        %v412 = vunpack.c.l.bf16 %v284
        %v413 = vunpack.c.l.bf16 %v285
        %v414 = vunpack.c.l.bf16 %v286
        %v415 = vunpack.c.l.bf16 %v287
        %v416 = vunpack.c.l.bf16 %v288
        %v417 = vunpack.c.l.bf16 %v289
        %v418 = vunpack.c.l.bf16 %v290
        %v419 = vunpack.c.l.bf16 %v291
        %v420 = vunpack.c.l.bf16 %v292
        %v421 = vunpack.c.l.bf16 %v293
        %v422 = vunpack.c.l.bf16 %v294
        %v423 = vunpack.c.l.bf16 %v295
        %v424 = vunpack.c.l.bf16 %v296
        %v425 = vunpack.c.l.bf16 %v297
        %v426 = vunpack.c.l.bf16 %v298
        %v427 = vunpack.c.l.bf16 %v299
        %v428 = vunpack.c.l.bf16 %v300
        %v429 = vunpack.c.l.bf16 %v301
        %v430 = vunpack.c.l.bf16 %v302
        %v431 = vunpack.c.l.bf16 %v303
        %v432 = vunpack.c.l.bf16 %v304
        %v433 = vunpack.c.l.bf16 %v305
        %v434 = vunpack.c.l.bf16 %v306
        %v435 = vunpack.c.l.bf16 %v307
        %v436 = vunpack.c.l.bf16 %v308
        %v437 = vunpack.c.l.bf16 %v309
        %v438 = vunpack.c.l.bf16 %v310
        %v439 = vunpack.c.l.bf16 %v311
        %v440 = vunpack.c.l.bf16 %v312
        %v441 = vunpack.c.l.bf16 %v313
        %v442 = vunpack.c.l.bf16 %v314
        %v443 = vunpack.c.l.bf16 %v315
        %v444 = vunpack.c.l.bf16 %v316
        %v445 = vunpack.c.l.bf16 %v317
        %v446 = vunpack.c.l.bf16 %v318
        %v447 = vunpack.c.l.bf16 %v319
        %v448 = vunpack.c.l.bf16 %v320
        %v449 = vunpack.c.l.bf16 %v321
        %v450 = vunpack.c.l.bf16 %v322
        %v451 = vunpack.c.l.bf16 %v323
        %v452 = vunpack.c.l.bf16 %v324
        %v453 = vunpack.c.l.bf16 %v325
        %v454 = vunpack.c.l.bf16 %v326
        %v455 = vunpack.c.l.bf16 %v327
        %v456 = vunpack.c.l.bf16 %v328
        %v457 = vunpack.c.l.bf16 %v329
        %v458 = vunpack.c.l.bf16 %v330
        %v459 = vunpack.c.l.bf16 %v331
        %v460 = vunpack.c.l.bf16 %v332
        %v461 = vunpack.c.l.bf16 %v333
        %v462 = vunpack.c.l.bf16 %v334
        %v463 = vunpack.c.l.bf16 %v335
        %v464 = vunpack.c.l.bf16 %v336
        %v465 = vunpack.c.l.bf16 %v337
        %v466 = vunpack.c.l.bf16 %v338
        %v467 = vunpack.c.l.bf16 %v339
        %v468 = vunpack.c.l.bf16 %v340
        %v469 = vunpack.c.l.bf16 %v341
        %v470 = vunpack.c.l.bf16 %v342
        %v471 = vunpack.c.l.bf16 %v343
        %v472 = vunpack.c.l.bf16 %v344
        %v473 = vunpack.c.l.bf16 %v345
        %v474 = vunpack.c.l.bf16 %v346
        %v475 = vunpack.c.l.bf16 %v347
        %v476 = vunpack.c.l.bf16 %v348
        %v477 = vunpack.c.l.bf16 %v349
        %v478 = vunpack.c.l.bf16 %v350
        %v479 = vunpack.c.l.bf16 %v351
        %v480 = vunpack.c.l.bf16 %v352
        %v481 = vunpack.c.l.bf16 %v353
        %v482 = vunpack.c.l.bf16 %v354
        %v483 = vunpack.c.l.bf16 %v355
        %v484 = vunpack.c.l.bf16 %v356
        %v485 = vunpack.c.l.bf16 %v357
        %v486 = vunpack.c.l.bf16 %v358
        %v487 = vunpack.c.l.bf16 %v359
        %v488 = vunpack.c.l.bf16 %v360
        %v489 = vunpack.c.l.bf16 %v361
        %v490 = vunpack.c.l.bf16 %v362
        %v491 = vunpack.c.l.bf16 %v363
        %v492 = vunpack.c.l.bf16 %v364
        %v493 = vunpack.c.l.bf16 %v365
        %v494 = vunpack.c.l.bf16 %v366
        %v495 = vunpack.c.l.bf16 %v367
        %v496 = vunpack.c.l.bf16 %v368
        %v497 = vunpack.c.l.bf16 %v369
        %v498 = vunpack.c.l.bf16 %v370
        %v499 = vunpack.c.l.bf16 %v371
        %v500 = vunpack.c.l.bf16 %v372
        %v501 = vunpack.c.l.bf16 %v373
        %v502 = vunpack.c.l.bf16 %v374
        %v503 = vunpack.c.l.bf16 %v375
        %v504 = vunpack.c.l.bf16 %v376
        %v505 = vunpack.c.l.bf16 %v377
        %v506 = vunpack.c.l.bf16 %v378
        %v507 = vunpack.c.l.bf16 %v379
        %v508 = vunpack.c.l.bf16 %v380
        %v509 = vunpack.c.l.bf16 %v381
        %v510 = vunpack.c.l.bf16 %v382
        %v511 = vunpack.c.l.bf16 %v383
        %v512 = vunpack.c.l.bf16 %v384
        %v513 = vunpack.c.l.bf16 %v385
        %v514 = vunpack.c.l.bf16 %v386
        %v515 = vunpack.c.l.bf16 %v387
        %v516 = vunpack.c.l.bf16 %v388
        %v517 = vunpack.c.l.bf16 %v389
        %v518 = vunpack.c.l.bf16 %v390
        %v519 = vunpack.c.l.bf16 %v391
        %v520 = vunpack.c.l.bf16 %v392
        %v521 = vunpack.c.l.bf16 %v393
        %v522 = vunpack.c.l.bf16 %v394
        %v523 = vunpack.c.l.bf16 %v395
        %v524 = vunpack.c.l.bf16 %v396
        %v525 = vunpack.c.l.bf16 %v397
        %v526 = vunpack.c.l.bf16 %v398
        %v527 = vld [vmem:[%s228] sm:$0xf]
        %v528 = vld [vmem:[%s228 + $0x4] sm:$0xf]
        %v529 = vld [vmem:[%s228 + $0x8] sm:$0xf]
        %v530 = vld [vmem:[%s228 + $0xc] sm:$0xf]
        %v531 = vld [vmem:[%s228 + $0x10] sm:$0xf]
        %v532 = vld [vmem:[%s228 + $0x14] sm:$0xf]
        %v533 = vld [vmem:[%s228 + $0x18] sm:$0xf]
        %v534 = vld [vmem:[%s228 + $0x1c] sm:$0xf]
        %v535 = vld [vmem:[%s228 + $0x20] sm:$0xf]
        %v536 = vld [vmem:[%s228 + $0x24] sm:$0xf]
        %v537 = vld [vmem:[%s228 + $0x28] sm:$0xf]
        %v538 = vld [vmem:[%s228 + $0x2c] sm:$0xf]
        %v539 = vld [vmem:[%s228 + $0x30] sm:$0xf]
        %v540 = vld [vmem:[%s228 + $0x34] sm:$0xf]
        %v541 = vld [vmem:[%s228 + $0x38] sm:$0xf]
        %v542 = vld [vmem:[%s228 + $0x3c] sm:$0xf]
        %v543 = vld [vmem:[%s228 + $0x40] sm:$0xf]
        %v544 = vld [vmem:[%s228 + $0x44] sm:$0xf]
        %v545 = vld [vmem:[%s228 + $0x48] sm:$0xf]
        %v546 = vld [vmem:[%s228 + $0x4c] sm:$0xf]
        %v547 = vld [vmem:[%s228 + $0x50] sm:$0xf]
        %v548 = vld [vmem:[%s228 + $0x54] sm:$0xf]
        %v549 = vld [vmem:[%s228 + $0x58] sm:$0xf]
        %v550 = vld [vmem:[%s228 + $0x5c] sm:$0xf]
        %v551 = vld [vmem:[%s228 + $0x60] sm:$0xf]
        %v552 = vld [vmem:[%s228 + $0x64] sm:$0xf]
        %v553 = vld [vmem:[%s228 + $0x68] sm:$0xf]
        %v554 = vld [vmem:[%s228 + $0x6c] sm:$0xf]
        %v555 = vld [vmem:[%s228 + $0x70] sm:$0xf]
        %v556 = vld [vmem:[%s228 + $0x74] sm:$0xf]
        %v557 = vld [vmem:[%s228 + $0x78] sm:$0xf]
        %v558 = vld [vmem:[%s228 + $0x7c] sm:$0xf]
        %v559 = vld [vmem:[%s228 + $0x80] sm:$0xf]
        %v560 = vld [vmem:[%s228 + $0x84] sm:$0xf]
        %v561 = vld [vmem:[%s228 + $0x88] sm:$0xf]
        %v562 = vld [vmem:[%s228 + $0x8c] sm:$0xf]
        %v563 = vld [vmem:[%s228 + $0x90] sm:$0xf]
        %v564 = vld [vmem:[%s228 + $0x94] sm:$0xf]
        %v565 = vld [vmem:[%s228 + $0x98] sm:$0xf]
        %v566 = vld [vmem:[%s228 + $0x9c] sm:$0xf]
        %v567 = vld [vmem:[%s228 + $0xa0] sm:$0xf]
        %v568 = vld [vmem:[%s228 + $0xa4] sm:$0xf]
        %v569 = vld [vmem:[%s228 + $0xa8] sm:$0xf]
        %v570 = vld [vmem:[%s228 + $0xac] sm:$0xf]
        %v571 = vld [vmem:[%s228 + $0xb0] sm:$0xf]
        %v572 = vld [vmem:[%s228 + $0xb4] sm:$0xf]
        %v573 = vld [vmem:[%s228 + $0xb8] sm:$0xf]
        %v574 = vld [vmem:[%s228 + $0xbc] sm:$0xf]
        %v575 = vld [vmem:[%s228 + $0xc0] sm:$0xf]
        %v576 = vld [vmem:[%s228 + $0xc4] sm:$0xf]
        %v577 = vld [vmem:[%s228 + $0xc8] sm:$0xf]
        %v578 = vld [vmem:[%s228 + $0xcc] sm:$0xf]
        %v579 = vld [vmem:[%s228 + $0xd0] sm:$0xf]
        %v580 = vld [vmem:[%s228 + $0xd4] sm:$0xf]
        %v581 = vld [vmem:[%s228 + $0xd8] sm:$0xf]
        %v582 = vld [vmem:[%s228 + $0xdc] sm:$0xf]
        %v583 = vld [vmem:[%s228 + $0xe0] sm:$0xf]
        %v584 = vld [vmem:[%s228 + $0xe4] sm:$0xf]
        %v585 = vld [vmem:[%s228 + $0xe8] sm:$0xf]
        %v586 = vld [vmem:[%s228 + $0xec] sm:$0xf]
        %v587 = vld [vmem:[%s228 + $0xf0] sm:$0xf]
        %v588 = vld [vmem:[%s228 + $0xf4] sm:$0xf]
        %v589 = vld [vmem:[%s228 + $0xf8] sm:$0xf]
        %v590 = vld [vmem:[%s228 + $0xfc] sm:$0xf]
        %v591 = vld [vmem:[%s228 + $0x100] sm:$0xf]
        %v592 = vld [vmem:[%s228 + $0x104] sm:$0xf]
        %v593 = vld [vmem:[%s228 + $0x108] sm:$0xf]
        %v594 = vld [vmem:[%s228 + $0x10c] sm:$0xf]
        %v595 = vld [vmem:[%s228 + $0x110] sm:$0xf]
        %v596 = vld [vmem:[%s228 + $0x114] sm:$0xf]
        %v597 = vld [vmem:[%s228 + $0x118] sm:$0xf]
        %v598 = vld [vmem:[%s228 + $0x11c] sm:$0xf]
        %v599 = vld [vmem:[%s228 + $0x120] sm:$0xf]
        %v600 = vld [vmem:[%s228 + $0x124] sm:$0xf]
        %v601 = vld [vmem:[%s228 + $0x128] sm:$0xf]
        %v602 = vld [vmem:[%s228 + $0x12c] sm:$0xf]
        %v603 = vld [vmem:[%s228 + $0x130] sm:$0xf]
        %v604 = vld [vmem:[%s228 + $0x134] sm:$0xf]
        %v605 = vld [vmem:[%s228 + $0x138] sm:$0xf]
        %v606 = vld [vmem:[%s228 + $0x13c] sm:$0xf]
        %v607 = vld [vmem:[%s228 + $0x140] sm:$0xf]
        %v608 = vld [vmem:[%s228 + $0x144] sm:$0xf]
        %v609 = vld [vmem:[%s228 + $0x148] sm:$0xf]
        %v610 = vld [vmem:[%s228 + $0x14c] sm:$0xf]
        %v611 = vld [vmem:[%s228 + $0x150] sm:$0xf]
        %v612 = vld [vmem:[%s228 + $0x154] sm:$0xf]
        %v613 = vld [vmem:[%s228 + $0x158] sm:$0xf]
        %v614 = vld [vmem:[%s228 + $0x15c] sm:$0xf]
        %v615 = vld [vmem:[%s228 + $0x160] sm:$0xf]
        %v616 = vld [vmem:[%s228 + $0x164] sm:$0xf]
        %v617 = vld [vmem:[%s228 + $0x168] sm:$0xf]
        %v618 = vld [vmem:[%s228 + $0x16c] sm:$0xf]
        %v619 = vld [vmem:[%s228 + $0x170] sm:$0xf]
        %v620 = vld [vmem:[%s228 + $0x174] sm:$0xf]
        %v621 = vld [vmem:[%s228 + $0x178] sm:$0xf]
        %v622 = vld [vmem:[%s228 + $0x17c] sm:$0xf]
        %v623 = vld [vmem:[%s228 + $0x180] sm:$0xf]
        %v624 = vld [vmem:[%s228 + $0x184] sm:$0xf]
        %v625 = vld [vmem:[%s228 + $0x188] sm:$0xf]
        %v626 = vld [vmem:[%s228 + $0x18c] sm:$0xf]
        %v627 = vld [vmem:[%s228 + $0x190] sm:$0xf]
        %v628 = vld [vmem:[%s228 + $0x194] sm:$0xf]
        %v629 = vld [vmem:[%s228 + $0x198] sm:$0xf]
        %v630 = vld [vmem:[%s228 + $0x19c] sm:$0xf]
        %v631 = vld [vmem:[%s228 + $0x1a0] sm:$0xf]
        %v632 = vld [vmem:[%s228 + $0x1a4] sm:$0xf]
        %v633 = vld [vmem:[%s228 + $0x1a8] sm:$0xf]
        %v634 = vld [vmem:[%s228 + $0x1ac] sm:$0xf]
        %v635 = vld [vmem:[%s228 + $0x1b0] sm:$0xf]
        %v636 = vld [vmem:[%s228 + $0x1b4] sm:$0xf]
        %v637 = vld [vmem:[%s228 + $0x1b8] sm:$0xf]
        %v638 = vld [vmem:[%s228 + $0x1bc] sm:$0xf]
        %v639 = vld [vmem:[%s228 + $0x1c0] sm:$0xf]
        %v640 = vld [vmem:[%s228 + $0x1c4] sm:$0xf]
        %v641 = vld [vmem:[%s228 + $0x1c8] sm:$0xf]
        %v642 = vld [vmem:[%s228 + $0x1cc] sm:$0xf]
        %v643 = vld [vmem:[%s228 + $0x1d0] sm:$0xf]
        %v644 = vld [vmem:[%s228 + $0x1d4] sm:$0xf]
        %v645 = vld [vmem:[%s228 + $0x1d8] sm:$0xf]
        %v646 = vld [vmem:[%s228 + $0x1dc] sm:$0xf]
        %v647 = vld [vmem:[%s228 + $0x1e0] sm:$0xf]
        %v648 = vld [vmem:[%s228 + $0x1e4] sm:$0xf]
        %v649 = vld [vmem:[%s228 + $0x1e8] sm:$0xf]
        %v650 = vld [vmem:[%s228 + $0x1ec] sm:$0xf]
        %v651 = vld [vmem:[%s228 + $0x1f0] sm:$0xf]
        %v652 = vld [vmem:[%s228 + $0x1f4] sm:$0xf]
        %v653 = vld [vmem:[%s228 + $0x1f8] sm:$0xf]
        %v654 = vld [vmem:[%s228 + $0x1fc] sm:$0xf]
        %v655 = vunpack.c.l.bf16 %v527
        %v656 = vunpack.c.l.bf16 %v528
        %v657 = vunpack.c.l.bf16 %v529
        %v658 = vunpack.c.l.bf16 %v530
        %v659 = vunpack.c.l.bf16 %v531
        %v660 = vunpack.c.l.bf16 %v532
        %v661 = vunpack.c.l.bf16 %v533
        %v662 = vunpack.c.l.bf16 %v534
        %v663 = vunpack.c.l.bf16 %v535
        %v664 = vunpack.c.l.bf16 %v536
        %v665 = vunpack.c.l.bf16 %v537
        %v666 = vunpack.c.l.bf16 %v538
        %v667 = vunpack.c.l.bf16 %v539
        %v668 = vunpack.c.l.bf16 %v540
        %v669 = vunpack.c.l.bf16 %v541
        %v670 = vunpack.c.l.bf16 %v542
        %v671 = vunpack.c.l.bf16 %v543
        %v672 = vunpack.c.l.bf16 %v544
        %v673 = vunpack.c.l.bf16 %v545
        %v674 = vunpack.c.l.bf16 %v546
        %v675 = vunpack.c.l.bf16 %v547
        %v676 = vunpack.c.l.bf16 %v548
        %v677 = vunpack.c.l.bf16 %v549
        %v678 = vunpack.c.l.bf16 %v550
        %v679 = vunpack.c.l.bf16 %v551
        %v680 = vunpack.c.l.bf16 %v552
        %v681 = vunpack.c.l.bf16 %v553
        %v682 = vunpack.c.l.bf16 %v554
        %v683 = vunpack.c.l.bf16 %v555
        %v684 = vunpack.c.l.bf16 %v556
        %v685 = vunpack.c.l.bf16 %v557
        %v686 = vunpack.c.l.bf16 %v558
        %v687 = vunpack.c.l.bf16 %v559
        %v688 = vunpack.c.l.bf16 %v560
        %v689 = vunpack.c.l.bf16 %v561
        %v690 = vunpack.c.l.bf16 %v562
        %v691 = vunpack.c.l.bf16 %v563
        %v692 = vunpack.c.l.bf16 %v564
        %v693 = vunpack.c.l.bf16 %v565
        %v694 = vunpack.c.l.bf16 %v566
        %v695 = vunpack.c.l.bf16 %v567
        %v696 = vunpack.c.l.bf16 %v568
        %v697 = vunpack.c.l.bf16 %v569
        %v698 = vunpack.c.l.bf16 %v570
        %v699 = vunpack.c.l.bf16 %v571
        %v700 = vunpack.c.l.bf16 %v572
        %v701 = vunpack.c.l.bf16 %v573
        %v702 = vunpack.c.l.bf16 %v574
        %v703 = vunpack.c.l.bf16 %v575
        %v704 = vunpack.c.l.bf16 %v576
        %v705 = vunpack.c.l.bf16 %v577
        %v706 = vunpack.c.l.bf16 %v578
        %v707 = vunpack.c.l.bf16 %v579
        %v708 = vunpack.c.l.bf16 %v580
        %v709 = vunpack.c.l.bf16 %v581
        %v710 = vunpack.c.l.bf16 %v582
        %v711 = vunpack.c.l.bf16 %v583
        %v712 = vunpack.c.l.bf16 %v584
        %v713 = vunpack.c.l.bf16 %v585
        %v714 = vunpack.c.l.bf16 %v586
        %v715 = vunpack.c.l.bf16 %v587
        %v716 = vunpack.c.l.bf16 %v588
        %v717 = vunpack.c.l.bf16 %v589
        %v718 = vunpack.c.l.bf16 %v590
        %v719 = vunpack.c.l.bf16 %v591
        %v720 = vunpack.c.l.bf16 %v592
        %v721 = vunpack.c.l.bf16 %v593
        %v722 = vunpack.c.l.bf16 %v594
        %v723 = vunpack.c.l.bf16 %v595
        %v724 = vunpack.c.l.bf16 %v596
        %v725 = vunpack.c.l.bf16 %v597
        %v726 = vunpack.c.l.bf16 %v598
        %v727 = vunpack.c.l.bf16 %v599
        %v728 = vunpack.c.l.bf16 %v600
        %v729 = vunpack.c.l.bf16 %v601
        %v730 = vunpack.c.l.bf16 %v602
        %v731 = vunpack.c.l.bf16 %v603
        %v732 = vunpack.c.l.bf16 %v604
        %v733 = vunpack.c.l.bf16 %v605
        %v734 = vunpack.c.l.bf16 %v606
        %v735 = vunpack.c.l.bf16 %v607
        %v736 = vunpack.c.l.bf16 %v608
        %v737 = vunpack.c.l.bf16 %v609
        %v738 = vunpack.c.l.bf16 %v610
        %v739 = vunpack.c.l.bf16 %v611
        %v740 = vunpack.c.l.bf16 %v612
        %v741 = vunpack.c.l.bf16 %v613
        %v742 = vunpack.c.l.bf16 %v614
        %v743 = vunpack.c.l.bf16 %v615
        %v744 = vunpack.c.l.bf16 %v616
        %v745 = vunpack.c.l.bf16 %v617
        %v746 = vunpack.c.l.bf16 %v618
        %v747 = vunpack.c.l.bf16 %v619
        %v748 = vunpack.c.l.bf16 %v620
        %v749 = vunpack.c.l.bf16 %v621
        %v750 = vunpack.c.l.bf16 %v622
        %v751 = vunpack.c.l.bf16 %v623
        %v752 = vunpack.c.l.bf16 %v624
        %v753 = vunpack.c.l.bf16 %v625
        %v754 = vunpack.c.l.bf16 %v626
        %v755 = vunpack.c.l.bf16 %v627
        %v756 = vunpack.c.l.bf16 %v628
        %v757 = vunpack.c.l.bf16 %v629
        %v758 = vunpack.c.l.bf16 %v630
        %v759 = vunpack.c.l.bf16 %v631
        %v760 = vunpack.c.l.bf16 %v632
        %v761 = vunpack.c.l.bf16 %v633
        %v762 = vunpack.c.l.bf16 %v634
        %v763 = vunpack.c.l.bf16 %v635
        %v764 = vunpack.c.l.bf16 %v636
        %v765 = vunpack.c.l.bf16 %v637
        %v766 = vunpack.c.l.bf16 %v638
        %v767 = vunpack.c.l.bf16 %v639
        %v768 = vunpack.c.l.bf16 %v640
        %v769 = vunpack.c.l.bf16 %v641
        %v770 = vunpack.c.l.bf16 %v642
        %v771 = vunpack.c.l.bf16 %v643
        %v772 = vunpack.c.l.bf16 %v644
        %v773 = vunpack.c.l.bf16 %v645
        %v774 = vunpack.c.l.bf16 %v646
        %v775 = vunpack.c.l.bf16 %v647
        %v776 = vunpack.c.l.bf16 %v648
        %v777 = vunpack.c.l.bf16 %v649
        %v778 = vunpack.c.l.bf16 %v650
        %v779 = vunpack.c.l.bf16 %v651
        %v780 = vunpack.c.l.bf16 %v652
        %v781 = vunpack.c.l.bf16 %v653
        %v782 = vunpack.c.l.bf16 %v654
        %v783 = vld [vmem:[#allocation2] sm:$0xff]
        %v784 = vadd.f32 %v399, %v400
        %v785 = vadd.f32 %v784, %v401
        %v786 = vadd.f32 %v785, %v402
        %v787 = vadd.f32 %v786, %v403
        %v788 = vadd.f32 %v787, %v404
        %v789 = vadd.f32 %v788, %v405
        %v790 = vadd.f32 %v789, %v406
        %v791 = vadd.f32 %v790, %v407
        %v792 = vadd.f32 %v791, %v408
        %v793 = vadd.f32 %v792, %v409
        %v794 = vadd.f32 %v793, %v410
        %v795 = vadd.f32 %v794, %v411
        %v796 = vadd.f32 %v795, %v412
        %v797 = vadd.f32 %v796, %v413
        %v798 = vadd.f32 %v797, %v414
        %v799 = vadd.f32 %v798, %v415
        %v800 = vadd.f32 %v799, %v416
        %v801 = vadd.f32 %v800, %v417
        %v802 = vadd.f32 %v801, %v418
        %v803 = vadd.f32 %v802, %v419
        %v804 = vadd.f32 %v803, %v420
        %v805 = vadd.f32 %v804, %v421
        %v806 = vadd.f32 %v805, %v422
        %v807 = vadd.f32 %v806, %v423
        %v808 = vadd.f32 %v807, %v424
        %v809 = vadd.f32 %v808, %v425
        %v810 = vadd.f32 %v809, %v426
        %v811 = vadd.f32 %v810, %v427
        %v812 = vadd.f32 %v811, %v428
        %v813 = vadd.f32 %v812, %v429
        %v814 = vadd.f32 %v813, %v430
        %v815 = vadd.f32 %v814, %v431
        %v816 = vadd.f32 %v815, %v432
        %v817 = vadd.f32 %v816, %v433
        %v818 = vadd.f32 %v817, %v434
        %v819 = vadd.f32 %v818, %v435
        %v820 = vadd.f32 %v819, %v436
        %v821 = vadd.f32 %v820, %v437
        %v822 = vadd.f32 %v821, %v438
        %v823 = vadd.f32 %v822, %v439
        %v824 = vadd.f32 %v823, %v440
        %v825 = vadd.f32 %v824, %v441
        %v826 = vadd.f32 %v825, %v442
        %v827 = vadd.f32 %v826, %v443
        %v828 = vadd.f32 %v827, %v444
        %v829 = vadd.f32 %v828, %v445
        %v830 = vadd.f32 %v829, %v446
        %v831 = vadd.f32 %v830, %v447
        %v832 = vadd.f32 %v831, %v448
        %v833 = vadd.f32 %v832, %v449
        %v834 = vadd.f32 %v833, %v450
        %v835 = vadd.f32 %v834, %v451
        %v836 = vadd.f32 %v835, %v452
        %v837 = vadd.f32 %v836, %v453
        %v838 = vadd.f32 %v837, %v454
        %v839 = vadd.f32 %v838, %v455
        %v840 = vadd.f32 %v839, %v456
        %v841 = vadd.f32 %v840, %v457
        %v842 = vadd.f32 %v841, %v458
        %v843 = vadd.f32 %v842, %v459
        %v844 = vadd.f32 %v843, %v460
        %v845 = vadd.f32 %v844, %v461
        %v846 = vadd.f32 %v845, %v462
        %v847 = vadd.f32 %v846, %v463
        %v848 = vadd.f32 %v847, %v464
        %v849 = vadd.f32 %v848, %v465
        %v850 = vadd.f32 %v849, %v466
        %v851 = vadd.f32 %v850, %v467
        %v852 = vadd.f32 %v851, %v468
        %v853 = vadd.f32 %v852, %v469
        %v854 = vadd.f32 %v853, %v470
        %v855 = vadd.f32 %v854, %v471
        %v856 = vadd.f32 %v855, %v472
        %v857 = vadd.f32 %v856, %v473
        %v858 = vadd.f32 %v857, %v474
        %v859 = vadd.f32 %v858, %v475
        %v860 = vadd.f32 %v859, %v476
        %v861 = vadd.f32 %v860, %v477
        %v862 = vadd.f32 %v861, %v478
        %v863 = vadd.f32 %v862, %v479
        %v864 = vadd.f32 %v863, %v480
        %v865 = vadd.f32 %v864, %v481
        %v866 = vadd.f32 %v865, %v482
        %v867 = vadd.f32 %v866, %v483
        %v868 = vadd.f32 %v867, %v484
        %v869 = vadd.f32 %v868, %v485
        %v870 = vadd.f32 %v869, %v486
        %v871 = vadd.f32 %v870, %v487
        %v872 = vadd.f32 %v871, %v488
        %v873 = vadd.f32 %v872, %v489
        %v874 = vadd.f32 %v873, %v490
        %v875 = vadd.f32 %v874, %v491
        %v876 = vadd.f32 %v875, %v492
        %v877 = vadd.f32 %v876, %v493
        %v878 = vadd.f32 %v877, %v494
        %v879 = vadd.f32 %v878, %v495
        %v880 = vadd.f32 %v879, %v496
        %v881 = vadd.f32 %v880, %v497
        %v882 = vadd.f32 %v881, %v498
        %v883 = vadd.f32 %v882, %v499
        %v884 = vadd.f32 %v883, %v500
        %v885 = vadd.f32 %v884, %v501
        %v886 = vadd.f32 %v885, %v502
        %v887 = vadd.f32 %v886, %v503
        %v888 = vadd.f32 %v887, %v504
        %v889 = vadd.f32 %v888, %v505
        %v890 = vadd.f32 %v889, %v506
        %v891 = vadd.f32 %v890, %v507
        %v892 = vadd.f32 %v891, %v508
        %v893 = vadd.f32 %v892, %v509
        %v894 = vadd.f32 %v893, %v510
        %v895 = vadd.f32 %v894, %v511
        %v896 = vadd.f32 %v895, %v512
        %v897 = vadd.f32 %v896, %v513
        %v898 = vadd.f32 %v897, %v514
        %v899 = vadd.f32 %v898, %v515
        %v900 = vadd.f32 %v899, %v516
        %v901 = vadd.f32 %v900, %v517
        %v902 = vadd.f32 %v901, %v518
        %v903 = vadd.f32 %v902, %v519
        %v904 = vadd.f32 %v903, %v520
        %v905 = vadd.f32 %v904, %v521
        %v906 = vadd.f32 %v905, %v522
        %v907 = vadd.f32 %v906, %v523
        %v908 = vadd.f32 %v907, %v524
        %v909 = vadd.f32 %v908, %v525
        %v910 = vadd.f32 %v909, %v526
        %v911 = vadd.f32 %v783, %v910
        %912 = vst [vmem:[#allocation2] sm:$0xff] %v911
        %v913 = vld [vmem:[#allocation3] sm:$0xff]
        %v914 = vadd.f32 %v655, %v656
        %v915 = vadd.f32 %v914, %v657
        %v916 = vadd.f32 %v915, %v658
        %v917 = vadd.f32 %v916, %v659
        %v918 = vadd.f32 %v917, %v660
        %v919 = vadd.f32 %v918, %v661
        %v920 = vadd.f32 %v919, %v662
        %v921 = vadd.f32 %v920, %v663
        %v922 = vadd.f32 %v921, %v664
        %v923 = vadd.f32 %v922, %v665
        %v924 = vadd.f32 %v923, %v666
        %v925 = vadd.f32 %v924, %v667
        %v926 = vadd.f32 %v925, %v668
        %v927 = vadd.f32 %v926, %v669
        %v928 = vadd.f32 %v927, %v670
        %v929 = vadd.f32 %v928, %v671
        %v930 = vadd.f32 %v929, %v672
        %v931 = vadd.f32 %v930, %v673
        %v932 = vadd.f32 %v931, %v674
        %v933 = vadd.f32 %v932, %v675
        %v934 = vadd.f32 %v933, %v676
        %v935 = vadd.f32 %v934, %v677
        %v936 = vadd.f32 %v935, %v678
        %v937 = vadd.f32 %v936, %v679
        %v938 = vadd.f32 %v937, %v680
        %v939 = vadd.f32 %v938, %v681
        %v940 = vadd.f32 %v939, %v682
        %v941 = vadd.f32 %v940, %v683
        %v942 = vadd.f32 %v941, %v684
        %v943 = vadd.f32 %v942, %v685
        %v944 = vadd.f32 %v943, %v686
        %v945 = vadd.f32 %v944, %v687
        %v946 = vadd.f32 %v945, %v688
        %v947 = vadd.f32 %v946, %v689
        %v948 = vadd.f32 %v947, %v690
        %v949 = vadd.f32 %v948, %v691
        %v950 = vadd.f32 %v949, %v692
        %v951 = vadd.f32 %v950, %v693
        %v952 = vadd.f32 %v951, %v694
        %v953 = vadd.f32 %v952, %v695
        %v954 = vadd.f32 %v953, %v696
        %v955 = vadd.f32 %v954, %v697
        %v956 = vadd.f32 %v955, %v698
        %v957 = vadd.f32 %v956, %v699
        %v958 = vadd.f32 %v957, %v700
        %v959 = vadd.f32 %v958, %v701
        %v960 = vadd.f32 %v959, %v702
        %v961 = vadd.f32 %v960, %v703
        %v962 = vadd.f32 %v961, %v704
        %v963 = vadd.f32 %v962, %v705
        %v964 = vadd.f32 %v963, %v706
        %v965 = vadd.f32 %v964, %v707
        %v966 = vadd.f32 %v965, %v708
        %v967 = vadd.f32 %v966, %v709
        %v968 = vadd.f32 %v967, %v710
        %v969 = vadd.f32 %v968, %v711
        %v970 = vadd.f32 %v969, %v712
        %v971 = vadd.f32 %v970, %v713
        %v972 = vadd.f32 %v971, %v714
        %v973 = vadd.f32 %v972, %v715
        %v974 = vadd.f32 %v973, %v716
        %v975 = vadd.f32 %v974, %v717
        %v976 = vadd.f32 %v975, %v718
        %v977 = vadd.f32 %v976, %v719
        %v978 = vadd.f32 %v977, %v720
        %v979 = vadd.f32 %v978, %v721
        %v980 = vadd.f32 %v979, %v722
        %v981 = vadd.f32 %v980, %v723
        %v982 = vadd.f32 %v981, %v724
        %v983 = vadd.f32 %v982, %v725
        %v984 = vadd.f32 %v983, %v726
        %v985 = vadd.f32 %v984, %v727
        %v986 = vadd.f32 %v985, %v728
        %v987 = vadd.f32 %v986, %v729
        %v988 = vadd.f32 %v987, %v730
        %v989 = vadd.f32 %v988, %v731
        %v990 = vadd.f32 %v989, %v732
        %v991 = vadd.f32 %v990, %v733
        %v992 = vadd.f32 %v991, %v734
        %v993 = vadd.f32 %v992, %v735
        %v994 = vadd.f32 %v993, %v736
        %v995 = vadd.f32 %v994, %v737
        %v996 = vadd.f32 %v995, %v738
        %v997 = vadd.f32 %v996, %v739
        %v998 = vadd.f32 %v997, %v740
        %v999 = vadd.f32 %v998, %v741
        %v1000 = vadd.f32 %v999, %v742
        %v1001 = vadd.f32 %v1000, %v743
        %v1002 = vadd.f32 %v1001, %v744
        %v1003 = vadd.f32 %v1002, %v745
        %v1004 = vadd.f32 %v1003, %v746
        %v1005 = vadd.f32 %v1004, %v747
        %v1006 = vadd.f32 %v1005, %v748
        %v1007 = vadd.f32 %v1006, %v749
        %v1008 = vadd.f32 %v1007, %v750
        %v1009 = vadd.f32 %v1008, %v751
        %v1010 = vadd.f32 %v1009, %v752
        %v1011 = vadd.f32 %v1010, %v753
        %v1012 = vadd.f32 %v1011, %v754
        %v1013 = vadd.f32 %v1012, %v755
        %v1014 = vadd.f32 %v1013, %v756
        %v1015 = vadd.f32 %v1014, %v757
        %v1016 = vadd.f32 %v1015, %v758
        %v1017 = vadd.f32 %v1016, %v759
        %v1018 = vadd.f32 %v1017, %v760
        %v1019 = vadd.f32 %v1018, %v761
        %v1020 = vadd.f32 %v1019, %v762
        %v1021 = vadd.f32 %v1020, %v763
        %v1022 = vadd.f32 %v1021, %v764
        %v1023 = vadd.f32 %v1022, %v765
        %v1024 = vadd.f32 %v1023, %v766
        %v1025 = vadd.f32 %v1024, %v767
        %v1026 = vadd.f32 %v1025, %v768
        %v1027 = vadd.f32 %v1026, %v769
        %v1028 = vadd.f32 %v1027, %v770
        %v1029 = vadd.f32 %v1028, %v771
        %v1030 = vadd.f32 %v1029, %v772
        %v1031 = vadd.f32 %v1030, %v773
        %v1032 = vadd.f32 %v1031, %v774
        %v1033 = vadd.f32 %v1032, %v775
        %v1034 = vadd.f32 %v1033, %v776
        %v1035 = vadd.f32 %v1034, %v777
        %v1036 = vadd.f32 %v1035, %v778
        %v1037 = vadd.f32 %v1036, %v779
        %v1038 = vadd.f32 %v1037, %v780
        %v1039 = vadd.f32 %v1038, %v781
        %v1040 = vadd.f32 %v1039, %v782
        %v1041 = vadd.f32 %v913, %v1040
        %1042 = vst [vmem:[#allocation3] sm:$0xff] %v1041
        // Predicated region
        $region49: #{_pairwise_cosine_sim.1} parent=31 // pred_check
          %p1043 = pneg %p265
        $region50: #{_pairwise_cosine_sim.1} parent=31 // pred_check_branch
          %1045 = sbr.rel (%p1043) target = $region52
        $region51: #{_pairwise_cosine_sim.1} parent=31 // pred_region
          %v1046 = vld [vmem:[#allocation2] sm:$0xff]
          %v1047 = vld [vmem:[#allocation8] sm:$0xff]
          %v1048 = vld [vmem:[#allocation8 + $0x8] sm:$0xff]
          %v1049 = vld [vmem:[#allocation8 + $0x10] sm:$0xff]
          %v1050 = vld [vmem:[#allocation8 + $0x18] sm:$0xff]
          %v1051 = vld [vmem:[#allocation8 + $0x20] sm:$0xff]
          %v1052 = vld [vmem:[#allocation8 + $0x28] sm:$0xff]
          %v1053 = vld [vmem:[#allocation8 + $0x30] sm:$0xff]
          %v1054 = vld [vmem:[#allocation8 + $0x38] sm:$0xff]
          %v1055 = vld [vmem:[#allocation8 + $0x40] sm:$0xff]
          %v1056 = vld [vmem:[#allocation8 + $0x48] sm:$0xff]
          %v1057 = vld [vmem:[#allocation8 + $0x50] sm:$0xff]
          %v1058 = vld [vmem:[#allocation8 + $0x58] sm:$0xff]
          %v1059 = vld [vmem:[#allocation8 + $0x60] sm:$0xff]
          %v1060 = vld [vmem:[#allocation8 + $0x68] sm:$0xff]
          %v1061 = vld [vmem:[#allocation8 + $0x70] sm:$0xff]
          %v1062 = vld [vmem:[#allocation8 + $0x78] sm:$0xff]
          %1063 = vmatprep.subr.mxu0 0.0
          %1064 = vmatpush1.msra.mxu0 %v1062
          %1065 = vmatprep.subr.mxu0 0.0
          %1066 = vmatpush1.msra.mxu0 %v1061
          %1067 = vmatprep.subr.mxu0 0.0
          %1068 = vmatpush1.msra.mxu0 %v1060
          %1069 = vmatprep.subr.mxu0 0.0
          %1070 = vmatpush1.msra.mxu0 %v1059
          %1071 = vmatprep.subr.mxu0 0.0
          %1072 = vmatpush1.msra.mxu0 %v1058
          %1073 = vmatprep.subr.mxu0 0.0
          %1074 = vmatpush1.msra.mxu0 %v1057
          %1075 = vmatprep.subr.mxu0 0.0
          %1076 = vmatpush1.msra.mxu0 %v1056
          %1077 = vmatprep.subr.mxu0 0.0
          %1078 = vmatpush1.msra.mxu0 %v1055
          %1079 = vmatprep.subr.mxu0 0.0
          %1080 = vmatpush1.msra.mxu0 %v1054
          %1081 = vmatprep.subr.mxu0 0.0
          %1082 = vmatpush1.msra.mxu0 %v1053
          %1083 = vmatprep.subr.mxu0 0.0
          %1084 = vmatpush1.msra.mxu0 %v1052
          %1085 = vmatprep.subr.mxu0 0.0
          %1086 = vmatpush1.msra.mxu0 %v1051
          %1087 = vmatprep.subr.mxu0 0.0
          %1088 = vmatpush1.msra.mxu0 %v1050
          %1089 = vmatprep.subr.mxu0 0.0
          %1090 = vmatpush1.msra.mxu0 %v1049
          %1091 = vmatprep.subr.mxu0 0.0
          %1092 = vmatpush1.msra.mxu0 %v1048
          %1093 = vmatprep.subr.mxu0 0.0
          %1094 = vmatpush1.msra.mxu0 %v1047
          %1095 = vmatprep.subr.mxu0 0.0
          %1096 = vmatpush2.msra.mxu0 0.0
          %1097 = vmatprep.subr.mxu0 0.0
          %1098 = vmatpush2.msra.mxu0 0.0
          %1099 = vmatprep.subr.mxu0 0.0
          %1100 = vmatpush2.msra.mxu0 0.0
          %1101 = vmatprep.subr.mxu0 0.0
          %1102 = vmatpush2.msra.mxu0 0.0
          %1103 = vmatprep.subr.mxu0 0.0
          %1104 = vmatpush2.msra.mxu0 0.0
          %1105 = vmatprep.subr.mxu0 0.0
          %1106 = vmatpush2.msra.mxu0 0.0
          %1107 = vmatprep.subr.mxu0 0.0
          %1108 = vmatpush2.msra.mxu0 0.0
          %1109 = vmatprep.subr.mxu0 0.0
          %1110 = vmatpush2.msra.mxu0 0.0
          %1111 = vmatprep.subr.mxu0 0.0
          %1112 = vmatpush2.msra.mxu0 0.0
          %1113 = vmatprep.subr.mxu0 0.0
          %1114 = vmatpush2.msra.mxu0 0.0
          %1115 = vmatprep.subr.mxu0 0.0
          %1116 = vmatpush2.msra.mxu0 0.0
          %1117 = vmatprep.subr.mxu0 0.0
          %1118 = vmatpush2.msra.mxu0 0.0
          %1119 = vmatprep.subr.mxu0 0.0
          %1120 = vmatpush2.msra.mxu0 0.0
          %1121 = vmatprep.subr.mxu0 0.0
          %1122 = vmatpush2.msra.mxu0 0.0
          %1123 = vmatprep.subr.mxu0 0.0
          %1124 = vmatpush2.msra.mxu0 0.0
          %1125 = vmatprep.subr.mxu0 0.0
          %1126 = vmatpush2.msra.mxu0 0.0
          %1127 = vmatprep.mubr.f32.mxu0 0.0
          %1128 = vmatmul.mubr.f32.gmra.mxu0 %v1046
          %v1129 = vpop.f32.mrf.mxu0
          %v1130 = vadd.f32 0.0, %v1129
          %v1131 = vpop.f32.mrf.mxu0
          %1132 = vdwg.mxu0
          %v1133 = vrot.slane %v1130, 4
          %v1134 = vadd.f32 %v1130, %v1133
          %v1135 = vrot.slane %v1134, 2
          %v1136 = vadd.f32 %v1134, %v1135
          %v1137 = vrot.slane %v1136, 1
          %v1138 = vadd.f32 %v1136, %v1137
          %v1139 = vld [vmem:[#allocation3] sm:$0xff]
          %1140 = vmatprep.subr.mxu0 0.0
          %1141 = vmatpush1.msra.mxu0 %v1062
          %1142 = vmatprep.subr.mxu0 0.0
          %1143 = vmatpush1.msra.mxu0 %v1061
          %1144 = vmatprep.subr.mxu0 0.0
          %1145 = vmatpush1.msra.mxu0 %v1060
          %1146 = vmatprep.subr.mxu0 0.0
          %1147 = vmatpush1.msra.mxu0 %v1059
          %1148 = vmatprep.subr.mxu0 0.0
          %1149 = vmatpush1.msra.mxu0 %v1058
          %1150 = vmatprep.subr.mxu0 0.0
          %1151 = vmatpush1.msra.mxu0 %v1057
          %1152 = vmatprep.subr.mxu0 0.0
          %1153 = vmatpush1.msra.mxu0 %v1056
          %1154 = vmatprep.subr.mxu0 0.0
          %1155 = vmatpush1.msra.mxu0 %v1055
          %1156 = vmatprep.subr.mxu0 0.0
          %1157 = vmatpush1.msra.mxu0 %v1054
          %1158 = vmatprep.subr.mxu0 0.0
          %1159 = vmatpush1.msra.mxu0 %v1053
          %1160 = vmatprep.subr.mxu0 0.0
          %1161 = vmatpush1.msra.mxu0 %v1052
          %1162 = vmatprep.subr.mxu0 0.0
          %1163 = vmatpush1.msra.mxu0 %v1051
          %1164 = vmatprep.subr.mxu0 0.0
          %1165 = vmatpush1.msra.mxu0 %v1050
          %1166 = vmatprep.subr.mxu0 0.0
          %1167 = vmatpush1.msra.mxu0 %v1049
          %1168 = vmatprep.subr.mxu0 0.0
          %1169 = vmatpush1.msra.mxu0 %v1048
          %1170 = vmatprep.subr.mxu0 0.0
          %1171 = vmatpush1.msra.mxu0 %v1047
          %1172 = vmatprep.subr.mxu0 0.0
          %1173 = vmatpush2.msra.mxu0 0.0
          %1174 = vmatprep.subr.mxu0 0.0
          %1175 = vmatpush2.msra.mxu0 0.0
          %1176 = vmatprep.subr.mxu0 0.0
          %1177 = vmatpush2.msra.mxu0 0.0
          %1178 = vmatprep.subr.mxu0 0.0
          %1179 = vmatpush2.msra.mxu0 0.0
          %1180 = vmatprep.subr.mxu0 0.0
          %1181 = vmatpush2.msra.mxu0 0.0
          %1182 = vmatprep.subr.mxu0 0.0
          %1183 = vmatpush2.msra.mxu0 0.0
          %1184 = vmatprep.subr.mxu0 0.0
          %1185 = vmatpush2.msra.mxu0 0.0
          %1186 = vmatprep.subr.mxu0 0.0
          %1187 = vmatpush2.msra.mxu0 0.0
          %1188 = vmatprep.subr.mxu0 0.0
          %1189 = vmatpush2.msra.mxu0 0.0
          %1190 = vmatprep.subr.mxu0 0.0
          %1191 = vmatpush2.msra.mxu0 0.0
          %1192 = vmatprep.subr.mxu0 0.0
          %1193 = vmatpush2.msra.mxu0 0.0
          %1194 = vmatprep.subr.mxu0 0.0
          %1195 = vmatpush2.msra.mxu0 0.0
          %1196 = vmatprep.subr.mxu0 0.0
          %1197 = vmatpush2.msra.mxu0 0.0
          %1198 = vmatprep.subr.mxu0 0.0
          %1199 = vmatpush2.msra.mxu0 0.0
          %1200 = vmatprep.subr.mxu0 0.0
          %1201 = vmatpush2.msra.mxu0 0.0
          %1202 = vmatprep.subr.mxu0 0.0
          %1203 = vmatpush2.msra.mxu0 0.0
          %1204 = vmatprep.mubr.f32.mxu0 0.0
          %1205 = vmatmul.mubr.f32.gmra.mxu0 %v1139
          %v1206 = vpop.f32.mrf.mxu0
          %v1207 = vadd.f32 0.0, %v1206
          %v1208 = vpop.f32.mrf.mxu0
          %1209 = vdwg.mxu0
          %v1210 = vrot.slane %v1207, 4
          %v1211 = vadd.f32 %v1207, %v1210
          %v1212 = vrot.slane %v1211, 2
          %v1213 = vadd.f32 %v1211, %v1212
          %v1214 = vrot.slane %v1213, 1
          %v1215 = vadd.f32 %v1213, %v1214
          %v1216 = vmul.f32 %v1138, %v1215
          %vm1217 = vcmask 1040384
          %v1218 = vsel %vm1217, %v1216, 0.0
          %1219 = vadd.xlane.f32.xlu0 %v1218
          %v1220 = vpop.xlane.xlu0 %1219
          %v1221 = vrot.slane %v1220, 4
          %v1222 = vadd.f32 %v1220, %v1221
          %v1223 = vrot.slane %v1222, 2
          %v1224 = vadd.f32 %v1222, %v1223
          %v1225 = vrot.slane %v1224, 1
          %v1226 = vadd.f32 %v1224, %v1225
          %s1227 = vtos %v1226
          %v1228 = vmul.f32 %v1138, %v1138
          %v1229 = vsel %vm1217, %v1228, 0.0
          %1230 = vadd.xlane.f32.xlu0 %v1229
          %v1231 = vpop.xlane.xlu0 %1230
          %v1232 = vrot.slane %v1231, 4
          %v1233 = vadd.f32 %v1231, %v1232
          %v1234 = vrot.slane %v1233, 2
          %v1235 = vadd.f32 %v1233, %v1234
          %v1236 = vrot.slane %v1235, 1
          %v1237 = vadd.f32 %v1235, %v1236
          %s1238 = vtos %v1237
          %v1239 = vmul.f32 %v1215, %v1215
          %v1240 = vsel %vm1217, %v1239, 0.0
          %1241 = vadd.xlane.f32.xlu0 %v1240
          %v1242 = vpop.xlane.xlu0 %1241
          %v1243 = vrot.slane %v1242, 4
          %v1244 = vadd.f32 %v1242, %v1243
          %v1245 = vrot.slane %v1244, 2
          %v1246 = vadd.f32 %v1244, %v1245
          %v1247 = vrot.slane %v1246, 1
          %v1248 = vadd.f32 %v1246, %v1247
          %s1249 = vtos %v1248
          %s1250 = smul.f32 %s1238, %s1249
          %s1251 = sadd.f32 %s1250, 1e-12
          %v1252 = vstv %s1251
          %v1253 = vrsqrt.pop %v1252
          %s1254 = vtos %v1253
          %s1255 = smul.f32 %s1227, %s1254
          %v1256 = vstv %s1255
          %1257 = vst [vmem:[%s264] sm:$0xff] %v1256
        $region52: #{_pairwise_cosine_sim.1} parent=31 // pred_fallthru
          _
        %p1258 = scmp.lt.s32.totalorder %s24, 1
        %s1259 = scalar_select %p1258, %s24, 1
        %s1260 = smul.addr %s1259, 8
        %s1261 = scalar_lea.vmem %s3, %s1260
        // Predicated region
        $region53: #{_pairwise_cosine_sim.1} parent=31 // pred_check
          %p1262 = pneg %p127
        $region54: #{_pairwise_cosine_sim.1} parent=31 // pred_check_branch
          %1264 = sbr.rel (%p1262) target = $region56
        $region55: #{_pairwise_cosine_sim.1} parent=31 // pred_region
          _
        $region56: #{_pairwise_cosine_sim.1} parent=31 // pred_fallthru
          _
      $region32: #{_pairwise_cosine_sim.1} parent=5 // pred_fallthru
        _
      %p1265 = scmp.le.s32.totalorder 2, %s15
      // Predicated region
      $region57: #{_pairwise_cosine_sim.1} parent=5 // pred_check
        %p1266 = pneg %p1265
      $region58: #{_pairwise_cosine_sim.1} parent=5 // pred_check_branch
        %1268 = sbr.rel (%p1266) target = $region60
      $region59: #{_pairwise_cosine_sim.1} parent=5 // pred_region
        %s1269 = ssub.s32 %s15, 2
        // Predicated region
        $region61: #{_pairwise_cosine_sim.1} parent=59 // pred_check
          %p1270 = pneg %p133
        $region62: #{_pairwise_cosine_sim.1} parent=59 // pred_check_branch
          %1272 = sbr.rel (%p1270) target = $region64
        $region63: #{_pairwise_cosine_sim.1} parent=59 // pred_region
          %p1273 = scmp.lt.s32.totalorder %s26, 1
          %s1274 = scalar_select %p1273, %s26, 1
          %s1275 = smul.addr %s1274, 8
          %s1276 = scalar_lea.vmem %s3, %s1275
        $region64: #{_pairwise_cosine_sim.1} parent=59 // pred_fallthru
          _
      $region60: #{_pairwise_cosine_sim.1} parent=5 // pred_fallthru
        _
    $region6: #{_pairwise_cosine_sim.1} parent=1 // loop_footer
      %s19 = sadd.s32 1, %s15
    $region7: #{_pairwise_cosine_sim.1} parent=1 // loop_footer_branch
      %14 = sbr.rel target = $region3
    $region8: #{_pairwise_cosine_sim.1} parent=1 // loop_exit
      _
    %1277 = vsyncpa [#allocation5], 1
    %s1278 = scalar_lea.sflag [#allocation5], 1
    %1279 = vsyncpa %s1278, 1
    %1280 = vsyncpa [#allocation7], 1
    %s1281 = scalar_lea.sflag [#allocation7], 1
    %1282 = vsyncpa %s1281, 1

</llo_original>
